<compile_context>
chip_gen: v7x
topology: tpu7x:2x2x1
jax: 0.10.0
libtpu: 0.0.40
codegen_flags: <defaults>
</compile_context>

<pallas_src>
import jax
import jax.numpy as jnp
from jax.experimental import pallas as pl
from jax.experimental.pallas import tpu as pltpu

_LANE = 128  # TPU vreg lane width


def _round_up(x, m):
    return (x + m - 1) // m * m


def _critic_kernel(x_ref, w1_ref, b1_ref, w2_ref, b2_ref, out_ref):
    # Layer 1: Linear(gcn_dim, gcn_dim) on the MXU with f32 accumulation;
    # bias + ReLU on the VPU in f32.
    h = jnp.dot(x_ref[...], w1_ref[...], preferred_element_type=jnp.float32)
    h = jnp.maximum(h + b1_ref[...], 0.0)
    # Dropout: identity at inference time.
    # Layer 2: Linear(gcn_dim, 1) as a VPU multiply + XLU lane-reduce
    # (avoids a padded second MXU matmul and a lane-padded output slab).
    v = jnp.sum(h * w2_ref[...], axis=-1, keepdims=True) + b2_ref[...]
    out_ref[...] = v


def prepare_critic_params(w1_t, b1, w2_t, b2, *, compute_dtype=jnp.float32):
    """Pad / cast the value-head parameters once (hoisted out of the forward path).

    w1_t: (D, D)  transposed nn.Linear(D, D).weight
    b1:   (D,)
    w2_t: (D, 1)  transposed nn.Linear(D, 1).weight
    b2:   (1,)
    """
    d = w1_t.shape[0]
    d_pad = _round_up(d, _LANE)
    pd = d_pad - d
    return {
        "w1": jnp.pad(w1_t.astype(compute_dtype), ((0, pd), (0, pd))),
        "b1": jnp.pad(b1.astype(jnp.float32), (0, pd)).reshape(1, d_pad),
        # Second layer runs on VPU/XLU; keep its tiny params in f32, laid out as a row.
        "w2_row": jnp.pad(w2_t.astype(jnp.float32).T, ((0, 0), (0, pd))),
        "b2": b2.astype(jnp.float32).reshape(1, 1),
        "d": d,
        "d_pad": d_pad,
        "compute_dtype": jnp.dtype(compute_dtype),
    }


def critic_object_forward(state, params, *, row_tile=512):
    """Forward of Critic_object: squeeze(Linear2(Dropout(ReLU(Linear1(state)))))."""
    d, d_pad = params["d"], params["d_pad"]
    cdt = params["compute_dtype"]

    x = state
    if x.ndim == 1:
        x = x[None, :]
    n = x.shape[0]
    assert x.shape[1] == d, f"expected feature dim {d}, got {x.shape[1]}"

    if x.dtype != cdt:
        x = x.astype(cdt)
    if d_pad != d:
        # Feature-dim padding only (padded cols hit zero weight rows -> exact).
        x = jnp.pad(x, ((0, 0), (0, d_pad - d)))

    # Tile plan: one un-gridded block for small N, big row tiles otherwise.
    if n <= row_tile:
        tile, grid = n, (1,)
    else:
        tile, grid = row_tile, (pl.cdiv(n, row_tile),)

    itemsize = jnp.dtype(cdt).itemsize
    w_bytes = d_pad * d_pad * itemsize
    cost = pl.CostEstimate(
        flops=2 * n * d_pad * d_pad + 3 * n * d_pad,
        transcendentals=0,
        bytes_accessed=int(n * d_pad * itemsize + w_bytes + n * 4 + 3 * d_pad * 4),
    )

    # Raise the scoped-VMEM limit only when the resident tiles need it
    # (defaults: 16 MiB on v5e, 32 MiB on v6e / v7x).
    vmem_est = 2 * tile * d_pad * itemsize + 2 * w_bytes + 2 * tile * 4 + 8 * d_pad * 4
    vmem_limit = None
    if vmem_est > 20 * 1024 * 1024:
        vmem_limit = min(int(vmem_est * 3 // 2), 100 * 1024 * 1024)

    out_shape = jax.ShapeDtypeStruct((n, 1), jnp.float32)

    def build(weight_buffers):
        wkw = {} if weight_buffers is None else dict(
            pipeline_mode=pl.Buffered(weight_buffers))
        return pl.pallas_call(
            _critic_kernel,
            out_shape=out_shape,
            grid=grid,
            in_specs=[
                pl.BlockSpec((tile, d_pad), lambda i: (i, 0)),          # state rows
                pl.BlockSpec((d_pad, d_pad), lambda i: (0, 0), **wkw),  # W1^T (resident)
                pl.BlockSpec((1, d_pad), lambda i: (0, 0), **wkw),      # b1
                pl.BlockSpec((1, d_pad), lambda i: (0, 0), **wkw),      # w2 row
                pl.BlockSpec((1, 1), lambda i: (0, 0), **wkw),          # b2
            ],
            out_specs=pl.BlockSpec((tile, 1), lambda i: (i, 0)),
            compiler_params=pltpu.CompilerParams(
                dimension_semantics=("parallel",),
                vmem_limit_bytes=vmem_limit,
            ),
            cost_estimate=cost,
        )

    args = (x, params["w1"], params["b1"], params["w2_row"], params["b2"])
    try:
        out = build(1)(*args)       # single-buffer the constant weight blocks
    except Exception:               # pl.Buffered(1) unsupported -> default buffering
        out = build(None)(*args)

    return jnp.squeeze(out)         # matches torch .squeeze()


def _reference(state, w1_t, b1, w2_t, b2):
    h = jnp.maximum(state @ w1_t + b1, 0.0)
    return jnp.squeeze(h @ w2_t + b2)


if __name__ == "__main__":
    gcn_dim = 128

    key = jax.random.PRNGKey(0)
    k_x1, k_x2, k_w1, k_b1, k_w2, k_b2 = jax.random.split(key, 6)

    # nn.Linear default init: U(-1/sqrt(fan_in), 1/sqrt(fan_in))
    bound = 1.0 / jnp.sqrt(jnp.float32(gcn_dim))
    w1_t = jax.random.uniform(k_w1, (gcn_dim, gcn_dim), jnp.float32, -bound, bound)
    b1 = jax.random.uniform(k_b1, (gcn_dim,), jnp.float32, -bound, bound)
    w2_t = jax.random.uniform(k_w2, (gcn_dim, 1), jnp.float32, -bound, bound)
    b2 = jax.random.uniform(k_b2, (1,), jnp.float32, -bound, bound)

    params_f32 = prepare_critic_params(w1_t, b1, w2_t, b2)

    # Small N (not a multiple of 8): single un-gridded block, no row padding.
    state_small = jax.random.normal(k_x1, (300, gcn_dim), dtype=jnp.float32)
    v_small = critic_object_forward(state_small, params_f32)
    jax.block_until_ready(v_small)
    ref_small = _reference(state_small, w1_t, b1, w2_t, b2)
    assert v_small.shape == ref_small.shape
    assert jnp.allclose(v_small, ref_small, atol=1e-5, rtol=1e-5)

    # Larger N: 512-row tiles with a ragged last block ("parallel" grid).
    state_big = jax.random.normal(k_x2, (1200, gcn_dim), dtype=jnp.float32)
    v_big = critic_object_forward(state_big, params_f32, row_tile=512)
    jax.block_until_ready(v_big)
    ref_big = _reference(state_big, w1_t, b1, w2_t, b2)
    assert v_big.shape == ref_big.shape
    assert jnp.allclose(v_big, ref_big, atol=1e-5, rtol=1e-5)

    # Optional bf16-operand path (f32 MXU accumulation): looser tolerance.
    params_bf16 = prepare_critic_params(w1_t, b1, w2_t, b2,
                                        compute_dtype=jnp.bfloat16)
    v_bf16 = critic_object_forward(state_big, params_bf16, row_tile=512)
    jax.block_until_ready(v_bf16)
    assert jnp.allclose(v_bf16, ref_big, atol=5e-2, rtol=5e-2)

    print("KERNEL_OK")
</pallas_src>

<mosaic_0001>
module attributes {stable_mosaic.version = 11 : i64} {
  func.func @_critic_kernel(%arg0: i32, %arg1: memref<300x128xf32, #tpu.memory_space<vmem>>, %arg2: memref<128x128xf32, #tpu.memory_space<vmem>>, %arg3: memref<1x128xf32, #tpu.memory_space<vmem>>, %arg4: memref<1x128xf32, #tpu.memory_space<vmem>>, %arg5: memref<1x1xf32, #tpu.memory_space<vmem>>, %arg6: memref<300x1xf32, #tpu.memory_space<vmem>>) attributes {dimension_semantics = [#tpu.dimension_semantics<parallel>], iteration_bounds = array<i64: 1>, scalar_prefetch = 0 : i64, scratch_operands = 0 : i64, tpu.core_type = #tpu.core_type<tc>, window_params = [{transform_indices = @transform_0, window_bounds = array<i64: 300, 128>}, {pipeline_mode = #tpu.pipeline_mode<synchronous>, transform_indices = @transform_1, window_bounds = array<i64: 128, 128>}, {pipeline_mode = #tpu.pipeline_mode<synchronous>, transform_indices = @transform_2, window_bounds = array<i64: 1, 128>}, {pipeline_mode = #tpu.pipeline_mode<synchronous>, transform_indices = @transform_3, window_bounds = array<i64: 1, 128>}, {pipeline_mode = #tpu.pipeline_mode<synchronous>, transform_indices = @transform_4, window_bounds = array<i64: 1, 1>}, {transform_indices = @transform_5, window_bounds = array<i64: 300, 1>}]} {
    %c0 = arith.constant 0 : index
    %c0_0 = arith.constant 0 : index
    %0 = vector.load %arg1[%c0, %c0_0] : memref<300x128xf32, #tpu.memory_space<vmem>>, vector<300x128xf32>
    %c0_1 = arith.constant 0 : index
    %c0_2 = arith.constant 0 : index
    %1 = vector.load %arg2[%c0_1, %c0_2] : memref<128x128xf32, #tpu.memory_space<vmem>>, vector<128x128xf32>
    %cst = arith.constant dense<0.000000e+00> : vector<300x128xf32>
    %2 = tpu.matmul %0, %1, %cst {dimension_numbers = #tpu.dot_dimension_numbers<[1], [0], [0], [1], [0, 0, 1, 1], [], []>} : vector<300x128xf32>, vector<128x128xf32>, vector<300x128xf32> -> vector<300x128xf32>
    %c0_3 = arith.constant 0 : index
    %c0_4 = arith.constant 0 : index
    %3 = vector.load %arg3[%c0_3, %c0_4] : memref<1x128xf32, #tpu.memory_space<vmem>>, vector<1x128xf32>
    %4 = vector.broadcast %3 : vector<1x128xf32> to vector<300x128xf32>
    %5 = arith.addf %2, %4 : vector<300x128xf32>
    %cst_5 = arith.constant 0.000000e+00 : f32
    %6 = vector.broadcast %cst_5 : f32 to vector<300x128xf32>
    %7 = arith.maximumf %5, %6 : vector<300x128xf32>
    %c0_6 = arith.constant 0 : index
    %c0_7 = arith.constant 0 : index
    %8 = vector.load %arg4[%c0_6, %c0_7] : memref<1x128xf32, #tpu.memory_space<vmem>>, vector<1x128xf32>
    %9 = vector.broadcast %8 : vector<1x128xf32> to vector<300x128xf32>
    %10 = arith.mulf %7, %9 : vector<300x128xf32>
    %cst_8 = arith.constant dense<0.000000e+00> : vector<300xf32>
    %11 = vector.multi_reduction <add>, %10, %cst_8 [1] : vector<300x128xf32> to vector<300xf32>
    %12 = vector.shape_cast %11 : vector<300xf32> to vector<300x1xf32>
    %c0_9 = arith.constant 0 : index
    %c0_10 = arith.constant 0 : index
    %13 = vector.load %arg5[%c0_9, %c0_10] : memref<1x1xf32, #tpu.memory_space<vmem>>, vector<1x1xf32>
    %14 = vector.broadcast %13 : vector<1x1xf32> to vector<300x1xf32>
    %15 = arith.addf %12, %14 : vector<300x1xf32>
    %c0_11 = arith.constant 0 : index
    %c0_12 = arith.constant 0 : index
    %16 = vector.load %arg6[%c0_11, %c0_12] : memref<300x1xf32, #tpu.memory_space<vmem>>, vector<300x1xf32>
    tpu.vector_store %arg6[%c0_11, %c0_12], %15 {strides = array<i32>} : memref<300x1xf32, #tpu.memory_space<vmem>>, vector<300x1xf32>,
    return
  }
  func.func @transform_0(%arg0: i32) -> (i32, i32) {
    %c0_i32 = arith.constant 0 : i32
    %c0_i32_0 = arith.constant 0 : i32
    return %arg0, %c0_i32 : i32, i32
  }
  func.func @transform_1(%arg0: i32) -> (i32, i32) {
    %c0_i32 = arith.constant 0 : i32
    %c0_i32_0 = arith.constant 0 : i32
    %c0_i32_1 = arith.constant 0 : i32
    return %c0_i32, %c0_i32_0 : i32, i32
  }
  func.func @transform_2(%arg0: i32) -> (i32, i32) {
    %c0_i32 = arith.constant 0 : i32
    %c0_i32_0 = arith.constant 0 : i32
    %c0_i32_1 = arith.constant 0 : i32
    return %c0_i32, %c0_i32_0 : i32, i32
  }
  func.func @transform_3(%arg0: i32) -> (i32, i32) {
    %c0_i32 = arith.constant 0 : i32
    %c0_i32_0 = arith.constant 0 : i32
    %c0_i32_1 = arith.constant 0 : i32
    return %c0_i32, %c0_i32_0 : i32, i32
  }
  func.func @transform_4(%arg0: i32) -> (i32, i32) {
    %c0_i32 = arith.constant 0 : i32
    %c0_i32_0 = arith.constant 0 : i32
    %c0_i32_1 = arith.constant 0 : i32
    return %c0_i32, %c0_i32_0 : i32, i32
  }
  func.func @transform_5(%arg0: i32) -> (i32, i32) {
    %c0_i32 = arith.constant 0 : i32
    %c0_i32_0 = arith.constant 0 : i32
    return %arg0, %c0_i32 : i32, i32
  }
}

module attributes {stable_mosaic.version = 11 : i64} {
  func.func @_critic_kernel(%arg0: i32, %arg1: memref<300x128xf32, #tpu.memory_space<vmem>>, %arg2: memref<128x128xf32, #tpu.memory_space<vmem>>, %arg3: memref<1x128xf32, #tpu.memory_space<vmem>>, %arg4: memref<1x128xf32, #tpu.memory_space<vmem>>, %arg5: memref<1x1xf32, #tpu.memory_space<vmem>>, %arg6: memref<300x1xf32, #tpu.memory_space<vmem>>) attributes {dimension_semantics = [#tpu.dimension_semantics<parallel>], iteration_bounds = array<i64: 1>, scalar_prefetch = 0 : i64, scratch_operands = 0 : i64, tpu.core_type = #tpu.core_type<tc>, window_params = [{transform_indices = @transform_0, window_bounds = array<i64: 300, 128>}, {pipeline_mode = #tpu.pipeline_mode<synchronous>, transform_indices = @transform_1, window_bounds = array<i64: 128, 128>}, {pipeline_mode = #tpu.pipeline_mode<synchronous>, transform_indices = @transform_2, window_bounds = array<i64: 1, 128>}, {pipeline_mode = #tpu.pipeline_mode<synchronous>, transform_indices = @transform_3, window_bounds = array<i64: 1, 128>}, {pipeline_mode = #tpu.pipeline_mode<synchronous>, transform_indices = @transform_4, window_bounds = array<i64: 1, 1>}, {transform_indices = @transform_5, window_bounds = array<i64: 300, 1>}]} {
    %c0 = arith.constant 0 : index
    %c0_0 = arith.constant 0 : index
    %0 = vector.load %arg1[%c0, %c0_0] : memref<300x128xf32, #tpu.memory_space<vmem>>, vector<300x128xf32>
    %c0_1 = arith.constant 0 : index
    %c0_2 = arith.constant 0 : index
    %1 = vector.load %arg2[%c0_1, %c0_2] : memref<128x128xf32, #tpu.memory_space<vmem>>, vector<128x128xf32>
    %cst = arith.constant dense<0.000000e+00> : vector<300x128xf32>
    %2 = tpu.matmul %0, %1, %cst {dimension_numbers = #tpu.dot_dimension_numbers<[1], [0], [0], [1], [0, 0, 1, 1], [], []>} : vector<300x128xf32>, vector<128x128xf32>, vector<300x128xf32> -> vector<300x128xf32>
    %c0_3 = arith.constant 0 : index
    %c0_4 = arith.constant 0 : index
    %3 = vector.load %arg3[%c0_3, %c0_4] : memref<1x128xf32, #tpu.memory_space<vmem>>, vector<1x128xf32>
    %4 = vector.broadcast %3 : vector<1x128xf32> to vector<300x128xf32>
    %5 = arith.addf %2, %4 : vector<300x128xf32>
    %cst_5 = arith.constant 0.000000e+00 : f32
    %6 = vector.broadcast %cst_5 : f32 to vector<300x128xf32>
    %7 = arith.maximumf %5, %6 : vector<300x128xf32>
    %c0_6 = arith.constant 0 : index
    %c0_7 = arith.constant 0 : index
    %8 = vector.load %arg4[%c0_6, %c0_7] : memref<1x128xf32, #tpu.memory_space<vmem>>, vector<1x128xf32>
    %9 = vector.broadcast %8 : vector<1x128xf32> to vector<300x128xf32>
    %10 = arith.mulf %7, %9 : vector<300x128xf32>
    %cst_8 = arith.constant dense<0.000000e+00> : vector<300xf32>
    %11 = vector.multi_reduction <add>, %10, %cst_8 [1] : vector<300x128xf32> to vector<300xf32>
    %12 = vector.shape_cast %11 : vector<300xf32> to vector<300x1xf32>
    %c0_9 = arith.constant 0 : index
    %c0_10 = arith.constant 0 : index
    %13 = vector.load %arg5[%c0_9, %c0_10] : memref<1x1xf32, #tpu.memory_space<vmem>>, vector<1x1xf32>
    %14 = vector.broadcast %13 : vector<1x1xf32> to vector<300x1xf32>
    %15 = arith.addf %12, %14 : vector<300x1xf32>
    %c0_11 = arith.constant 0 : index
    %c0_12 = arith.constant 0 : index
    %16 = vector.load %arg6[%c0_11, %c0_12] : memref<300x1xf32, #tpu.memory_space<vmem>>, vector<300x1xf32>
    tpu.vector_store %arg6[%c0_11, %c0_12], %15 {strides = array<i32>} : memref<300x1xf32, #tpu.memory_space<vmem>>, vector<300x1xf32>,
    return
  }
  func.func @transform_0(%arg0: i32) -> (i32, i32) {
    %c0_i32 = arith.constant 0 : i32
    %c0_i32_0 = arith.constant 0 : i32
    return %arg0, %c0_i32 : i32, i32
  }
  func.func @transform_1(%arg0: i32) -> (i32, i32) {
    %c0_i32 = arith.constant 0 : i32
    %c0_i32_0 = arith.constant 0 : i32
    %c0_i32_1 = arith.constant 0 : i32
    return %c0_i32, %c0_i32_0 : i32, i32
  }
  func.func @transform_2(%arg0: i32) -> (i32, i32) {
    %c0_i32 = arith.constant 0 : i32
    %c0_i32_0 = arith.constant 0 : i32
    %c0_i32_1 = arith.constant 0 : i32
    return %c0_i32, %c0_i32_0 : i32, i32
  }
  func.func @transform_3(%arg0: i32) -> (i32, i32) {
    %c0_i32 = arith.constant 0 : i32
    %c0_i32_0 = arith.constant 0 : i32
    %c0_i32_1 = arith.constant 0 : i32
    return %c0_i32, %c0_i32_0 : i32, i32
  }
  func.func @transform_4(%arg0: i32) -> (i32, i32) {
    %c0_i32 = arith.constant 0 : i32
    %c0_i32_0 = arith.constant 0 : i32
    %c0_i32_1 = arith.constant 0 : i32
    return %c0_i32, %c0_i32_0 : i32, i32
  }
  func.func @transform_5(%arg0: i32) -> (i32, i32) {
    %c0_i32 = arith.constant 0 : i32
    %c0_i32_0 = arith.constant 0 : i32
    return %arg0, %c0_i32 : i32, i32
  }
}

</mosaic_0001>

<llo_original>
// kernel: tpu_custom_call.1
$region0: #{tpu_custom_call.1}
  #allocation0 [shape = 'u32[]', space=smem, size = 0x4, offset = 0x4, fixed_abs, tag = 'smem constant byte address 0x4 - core index']
  #allocation1 [shape = 'u32[144,128]{1,0:T(1,128)}', space=vmem, size = 0x12000, scoped, tag = 'internal scratch']
  #allocation2 [shape = 'f32[1,1]{1,0:T(1,128)S(1)}', space=vmem, size = 0x200, scoped, tag = 'scoped memory for tpu_custom_call.1']
  %s0 = inlined_call_operand.hbm [shape: f32[300,128], index: 0, kind: input, shape index: {}]
  %s1 = inlined_call_operand.hbm [shape: f32[128,128], index: 1, kind: input, shape index: {}]
  %s2 = inlined_call_operand.vmem [shape: f32[1,128], index: 2, kind: input, shape index: {}]
  %s3 = inlined_call_operand.vmem [shape: f32[1,128], index: 3, kind: input, shape index: {}]
  %s4 = inlined_call_operand.<no memory space> [shape: f32[1,1], index: 4, kind: input, shape index: {}]
  %s5 = inlined_call_operand.vmem [shape: f32[300,1], index: 5, kind: output, shape index: {}]
  %s6 = sld [smem:[#allocation0]]
  $region38: #{tpu_custom_call.1} parent=0
    _
  %s8 = ssub.s32 1, %s6
  %s9 = scalar_select 0, %s8, %s6
  %v10 = vstv %s4
  %11 = vst [vmem:[#allocation2] sm:$0x1] %v10
  $region1: #{tpu_custom_call.1} parent=0
    #allocation3 [shape = 'u8[155648]{0}', space=vmem, size = 0x26000, scoped, tag = 'input window, operand 0, single buffered']
    #allocation4 [shape = 's32[1]{0}', space=sflag, size = 0x4, scoped, tag = 'scoped memory for tpu_custom_call.1']
    #allocation5 [shape = 'u8[65536]{0}', space=vmem, size = 0x10000, scoped, tag = 'input window, operand 1, single buffered']
    #allocation6 [shape = 's32[1]{0}', space=sflag, size = 0x4, scoped, tag = 'scoped memory for tpu_custom_call.1']
    %12 = vsyncpa [#allocation4], 0
    %13 = vsyncpa [#allocation6], 0
    // Predicated region
    $region2: #{tpu_custom_call.1} parent=1 // pred_check
      _
    $region3: #{tpu_custom_call.1} parent=1 // pred_check_branch
      %15 = sbr.rel (0) target = $region5
    $region4: #{tpu_custom_call.1} parent=1 // pred_region
      %s17 = ssub.s32 4864, 4864
      %18 = vsyncadd [#allocation4], %s17
      %s19 = sshll.u32 [#allocation3], 4
      %s20 = int_to_ptr.vmem [resolvable:$true] %s19
      %25 = dma.hbm_to_vmem [thread:$0]  %s0, 4864, %s20, [#allocation4], 128, 128, 8
    $region5: #{tpu_custom_call.1} parent=1 // pred_fallthru
      _
    // Predicated region
    $region6: #{tpu_custom_call.1} parent=1 // pred_check
      _
    $region7: #{tpu_custom_call.1} parent=1 // pred_check_branch
      %27 = sbr.rel (0) target = $region9
    $region8: #{tpu_custom_call.1} parent=1 // pred_region
      %s29 = ssub.s32 2048, 2048
      %30 = vsyncadd [#allocation6], %s29
      %s31 = sshll.u32 [#allocation5], 4
      %s32 = int_to_ptr.vmem [resolvable:$true] %s31
      %37 = dma.hbm_to_vmem [thread:$0]  %s1, 2048, %s32, [#allocation6], 128, 128, 8
    $region9: #{tpu_custom_call.1} parent=1 // pred_fallthru
      _
    // Predicated region
    $region10: #{tpu_custom_call.1} parent=1 // pred_check
      _
    $region11: #{tpu_custom_call.1} parent=1 // pred_check_branch
      %39 = sbr.rel (0) target = $region13
    $region12: #{tpu_custom_call.1} parent=1 // pred_region
      _
    $region13: #{tpu_custom_call.1} parent=1 // pred_fallthru
      _
    // Predicated region
    $region14: #{tpu_custom_call.1} parent=1 // pred_check
      _
    $region15: #{tpu_custom_call.1} parent=1 // pred_check_branch
      %41 = sbr.rel (0) target = $region17
    $region16: #{tpu_custom_call.1} parent=1 // pred_region
      _
    $region17: #{tpu_custom_call.1} parent=1 // pred_fallthru
      _
    // Predicated region
    $region18: #{tpu_custom_call.1} parent=1 // pred_check
      _
    $region19: #{tpu_custom_call.1} parent=1 // pred_check_branch
      %43 = sbr.rel (0) target = $region21
    $region20: #{tpu_custom_call.1} parent=1 // pred_region
      _
    $region21: #{tpu_custom_call.1} parent=1 // pred_fallthru
      _
    // Predicated region
    $region22: #{tpu_custom_call.1} parent=1 // pred_check
      _
    $region23: #{tpu_custom_call.1} parent=1 // pred_check_branch
      %45 = sbr.rel (0) target = $region25
    $region24: #{tpu_custom_call.1} parent=1 // pred_region
      %46 = dma.done [#allocation4], 4864
    $region25: #{tpu_custom_call.1} parent=1 // pred_fallthru
      _
    // Predicated region
    $region26: #{tpu_custom_call.1} parent=1 // pred_check
      _
    $region27: #{tpu_custom_call.1} parent=1 // pred_check_branch
      %48 = sbr.rel (0) target = $region29
    $region28: #{tpu_custom_call.1} parent=1 // pred_region
      %49 = dma.done [#allocation6], 2048
    $region29: #{tpu_custom_call.1} parent=1 // pred_fallthru
      _
    %v50 = vld [vmem:[#allocation3] sm:$0xff]
    %v51 = vld [vmem:[#allocation3 + $0x8] sm:$0xff]
    %v52 = vld [vmem:[#allocation3 + $0x10] sm:$0xff]
    %v53 = vld [vmem:[#allocation3 + $0x18] sm:$0xff]
    %v54 = vld [vmem:[#allocation3 + $0x20] sm:$0xff]
    %v55 = vld [vmem:[#allocation3 + $0x28] sm:$0xff]
    %v56 = vld [vmem:[#allocation3 + $0x30] sm:$0xff]
    %v57 = vld [vmem:[#allocation3 + $0x38] sm:$0xff]
    %v58 = vld [vmem:[#allocation3 + $0x40] sm:$0xff]
    %v59 = vld [vmem:[#allocation3 + $0x48] sm:$0xff]
    %v60 = vld [vmem:[#allocation3 + $0x50] sm:$0xff]
    %v61 = vld [vmem:[#allocation3 + $0x58] sm:$0xff]
    %v62 = vld [vmem:[#allocation3 + $0x60] sm:$0xff]
    %v63 = vld [vmem:[#allocation3 + $0x68] sm:$0xff]
    %v64 = vld [vmem:[#allocation3 + $0x70] sm:$0xff]
    %v65 = vld [vmem:[#allocation3 + $0x78] sm:$0xff]
    %v66 = vld [vmem:[#allocation3 + $0x80] sm:$0xff]
    %v67 = vld [vmem:[#allocation3 + $0x88] sm:$0xff]
    %v68 = vld [vmem:[#allocation3 + $0x90] sm:$0xff]
    %v69 = vld [vmem:[#allocation3 + $0x98] sm:$0xff]
    %v70 = vld [vmem:[#allocation3 + $0xa0] sm:$0xff]
    %v71 = vld [vmem:[#allocation3 + $0xa8] sm:$0xff]
    %v72 = vld [vmem:[#allocation3 + $0xb0] sm:$0xff]
    %v73 = vld [vmem:[#allocation3 + $0xb8] sm:$0xff]
    %v74 = vld [vmem:[#allocation3 + $0xc0] sm:$0xff]
    %v75 = vld [vmem:[#allocation3 + $0xc8] sm:$0xff]
    %v76 = vld [vmem:[#allocation3 + $0xd0] sm:$0xff]
    %v77 = vld [vmem:[#allocation3 + $0xd8] sm:$0xff]
    %v78 = vld [vmem:[#allocation3 + $0xe0] sm:$0xff]
    %v79 = vld [vmem:[#allocation3 + $0xe8] sm:$0xff]
    %v80 = vld [vmem:[#allocation3 + $0xf0] sm:$0xff]
    %v81 = vld [vmem:[#allocation3 + $0xf8] sm:$0xff]
    %v82 = vld [vmem:[#allocation3 + $0x100] sm:$0xff]
    %v83 = vld [vmem:[#allocation3 + $0x108] sm:$0xff]
    %v84 = vld [vmem:[#allocation3 + $0x110] sm:$0xff]
    %v85 = vld [vmem:[#allocation3 + $0x118] sm:$0xff]
    %v86 = vld [vmem:[#allocation3 + $0x120] sm:$0xff]
    %v87 = vld [vmem:[#allocation3 + $0x128] sm:$0xf]
    %v88 = vld [vmem:[#allocation5] sm:$0xff]
    %v89 = vld [vmem:[#allocation5 + $0x8] sm:$0xff]
    %v90 = vld [vmem:[#allocation5 + $0x10] sm:$0xff]
    %v91 = vld [vmem:[#allocation5 + $0x18] sm:$0xff]
    %v92 = vld [vmem:[#allocation5 + $0x20] sm:$0xff]
    %v93 = vld [vmem:[#allocation5 + $0x28] sm:$0xff]
    %v94 = vld [vmem:[#allocation5 + $0x30] sm:$0xff]
    %v95 = vld [vmem:[#allocation5 + $0x38] sm:$0xff]
    %v96 = vld [vmem:[#allocation5 + $0x40] sm:$0xff]
    %v97 = vld [vmem:[#allocation5 + $0x48] sm:$0xff]
    %v98 = vld [vmem:[#allocation5 + $0x50] sm:$0xff]
    %v99 = vld [vmem:[#allocation5 + $0x58] sm:$0xff]
    %v100 = vld [vmem:[#allocation5 + $0x60] sm:$0xff]
    %v101 = vld [vmem:[#allocation5 + $0x68] sm:$0xff]
    %v102 = vld [vmem:[#allocation5 + $0x70] sm:$0xff]
    %v103 = vld [vmem:[#allocation5 + $0x78] sm:$0xff]
    %v104 = vld [vmem:[%s2] sm:$0x1]
    %v106 = vlaneseq
    %v107 = vshrl.u32 %v106, 7
    %v108 = vsub.s32 0, %v107
    %v109 = vrot.slane %v104, %v108
    %111 = vmatprep.subr.mxu0 0.0
    %112 = vmatpush1.msra.mxu0 %v88
    %113 = vmatprep.subr.mxu0 0.0
    %114 = vmatpush1.msra.mxu0 %v89
    %115 = vmatprep.subr.mxu0 0.0
    %116 = vmatpush1.msra.mxu0 %v90
    %117 = vmatprep.subr.mxu0 0.0
    %118 = vmatpush1.msra.mxu0 %v91
    %119 = vmatprep.subr.mxu0 0.0
    %120 = vmatpush1.msra.mxu0 %v92
    %121 = vmatprep.subr.mxu0 0.0
    %122 = vmatpush1.msra.mxu0 %v93
    %123 = vmatprep.subr.mxu0 0.0
    %124 = vmatpush1.msra.mxu0 %v94
    %125 = vmatprep.subr.mxu0 0.0
    %126 = vmatpush1.msra.mxu0 %v95
    %127 = vmatprep.subr.mxu0 0.0
    %128 = vmatpush1.msra.mxu0 %v96
    %129 = vmatprep.subr.mxu0 0.0
    %130 = vmatpush1.msra.mxu0 %v97
    %131 = vmatprep.subr.mxu0 0.0
    %132 = vmatpush1.msra.mxu0 %v98
    %133 = vmatprep.subr.mxu0 0.0
    %134 = vmatpush1.msra.mxu0 %v99
    %135 = vmatprep.subr.mxu0 0.0
    %136 = vmatpush1.msra.mxu0 %v100
    %137 = vmatprep.subr.mxu0 0.0
    %138 = vmatpush1.msra.mxu0 %v101
    %139 = vmatprep.subr.mxu0 0.0
    %140 = vmatpush1.msra.mxu0 %v102
    %141 = vmatprep.subr.mxu0 0.0
    %142 = vmatpush1.msra.mxu0 %v103
    %143 = vmatprep.subr.mxu0 0.0
    %144 = vmatpush1.msra.mxu0 0.0
    %145 = vmatprep.subr.mxu0 0.0
    %146 = vmatpush1.msra.mxu0 0.0
    %147 = vmatprep.subr.mxu0 0.0
    %148 = vmatpush1.msra.mxu0 0.0
    %149 = vmatprep.subr.mxu0 0.0
    %150 = vmatpush1.msra.mxu0 0.0
    %151 = vmatprep.subr.mxu0 0.0
    %152 = vmatpush1.msra.mxu0 0.0
    %153 = vmatprep.subr.mxu0 0.0
    %154 = vmatpush1.msra.mxu0 0.0
    %155 = vmatprep.subr.mxu0 0.0
    %156 = vmatpush1.msra.mxu0 0.0
    %157 = vmatprep.subr.mxu0 0.0
    %158 = vmatpush1.msra.mxu0 0.0
    %159 = vmatprep.subr.mxu0 0.0
    %160 = vmatpush1.msra.mxu0 0.0
    %161 = vmatprep.subr.mxu0 0.0
    %162 = vmatpush1.msra.mxu0 0.0
    %163 = vmatprep.subr.mxu0 0.0
    %164 = vmatpush1.msra.mxu0 0.0
    %165 = vmatprep.subr.mxu0 0.0
    %166 = vmatpush1.msra.mxu0 0.0
    %167 = vmatprep.subr.mxu0 0.0
    %168 = vmatpush1.msra.mxu0 0.0
    %169 = vmatprep.subr.mxu0 0.0
    %170 = vmatpush1.msra.mxu0 0.0
    %171 = vmatprep.subr.mxu0 0.0
    %172 = vmatpush1.msra.mxu0 0.0
    %173 = vmatprep.subr.mxu0 0.0
    %174 = vmatpush1.msra.mxu0 0.0
    %175 = vmatprep.mubr.f32.mxu0 0.0
    %176 = vmatmul.mubr.f32.gmra.mrb[0].mxu0 %v50
    %v177 = vpop.f32.mrb[0].mxu0
    %v178 = vadd.f32 %v109, %v177
    %v179 = vpop.f32.mrb[0].mxu0
    %180 = vmatprep.mubr.f32.mxu0 0.0
    %181 = vmatmul.mubr.f32.gmra.mrb[0].mxu0 %v51
    %v182 = vpop.f32.mrb[0].mxu0
    %v183 = vadd.f32 %v109, %v182
    %v184 = vpop.f32.mrb[0].mxu0
    %185 = vmatprep.mubr.f32.mxu0 0.0
    %186 = vmatmul.mubr.f32.gmra.mrb[0].mxu0 %v52
    %v187 = vpop.f32.mrb[0].mxu0
    %v188 = vadd.f32 %v109, %v187
    %v189 = vpop.f32.mrb[0].mxu0
    %190 = vmatprep.mubr.f32.mxu0 0.0
    %191 = vmatmul.mubr.f32.gmra.mrb[0].mxu0 %v53
    %v192 = vpop.f32.mrb[0].mxu0
    %v193 = vadd.f32 %v109, %v192
    %v194 = vpop.f32.mrb[0].mxu0
    %195 = vmatprep.mubr.f32.mxu0 0.0
    %196 = vmatmul.mubr.f32.gmra.mrb[0].mxu0 %v54
    %v197 = vpop.f32.mrb[0].mxu0
    %v198 = vadd.f32 %v109, %v197
    %v199 = vpop.f32.mrb[0].mxu0
    %200 = vmatprep.mubr.f32.mxu0 0.0
    %201 = vmatmul.mubr.f32.gmra.mrb[0].mxu0 %v55
    %v202 = vpop.f32.mrb[0].mxu0
    %v203 = vadd.f32 %v109, %v202
    %v204 = vpop.f32.mrb[0].mxu0
    %205 = vmatprep.mubr.f32.mxu0 0.0
    %206 = vmatmul.mubr.f32.gmra.mrb[0].mxu0 %v56
    %v207 = vpop.f32.mrb[0].mxu0
    %v208 = vadd.f32 %v109, %v207
    %v209 = vpop.f32.mrb[0].mxu0
    %210 = vmatprep.mubr.f32.mxu0 0.0
    %211 = vmatmul.mubr.f32.gmra.mrb[0].mxu0 %v57
    %v212 = vpop.f32.mrb[0].mxu0
    %v213 = vadd.f32 %v109, %v212
    %v214 = vpop.f32.mrb[0].mxu0
    %215 = vmatprep.mubr.f32.mxu0 0.0
    %216 = vmatmul.mubr.f32.gmra.mrb[0].mxu0 %v58
    %v217 = vpop.f32.mrb[0].mxu0
    %v218 = vadd.f32 %v109, %v217
    %v219 = vpop.f32.mrb[0].mxu0
    %220 = vmatprep.mubr.f32.mxu0 0.0
    %221 = vmatmul.mubr.f32.gmra.mrb[0].mxu0 %v59
    %v222 = vpop.f32.mrb[0].mxu0
    %v223 = vadd.f32 %v109, %v222
    %v224 = vpop.f32.mrb[0].mxu0
    %225 = vmatprep.mubr.f32.mxu0 0.0
    %226 = vmatmul.mubr.f32.gmra.mrb[0].mxu0 %v60
    %v227 = vpop.f32.mrb[0].mxu0
    %v228 = vadd.f32 %v109, %v227
    %v229 = vpop.f32.mrb[0].mxu0
    %230 = vmatprep.mubr.f32.mxu0 0.0
    %231 = vmatmul.mubr.f32.gmra.mrb[0].mxu0 %v61
    %v232 = vpop.f32.mrb[0].mxu0
    %v233 = vadd.f32 %v109, %v232
    %v234 = vpop.f32.mrb[0].mxu0
    %235 = vmatprep.mubr.f32.mxu0 0.0
    %236 = vmatmul.mubr.f32.gmra.mrb[0].mxu0 %v62
    %v237 = vpop.f32.mrb[0].mxu0
    %v238 = vadd.f32 %v109, %v237
    %v239 = vpop.f32.mrb[0].mxu0
    %240 = vmatprep.mubr.f32.mxu0 0.0
    %241 = vmatmul.mubr.f32.gmra.mrb[0].mxu0 %v63
    %v242 = vpop.f32.mrb[0].mxu0
    %v243 = vadd.f32 %v109, %v242
    %v244 = vpop.f32.mrb[0].mxu0
    %245 = vmatprep.mubr.f32.mxu0 0.0
    %246 = vmatmul.mubr.f32.gmra.mrb[0].mxu0 %v64
    %v247 = vpop.f32.mrb[0].mxu0
    %v248 = vadd.f32 %v109, %v247
    %v249 = vpop.f32.mrb[0].mxu0
    %250 = vmatprep.mubr.f32.mxu0 0.0
    %251 = vmatmul.mubr.f32.gmra.mrb[0].mxu0 %v65
    %v252 = vpop.f32.mrb[0].mxu0
    %v253 = vadd.f32 %v109, %v252
    %v254 = vpop.f32.mrb[0].mxu0
    %255 = vmatprep.mubr.f32.mxu0 0.0
    %256 = vmatmul.mubr.f32.gmra.mrb[0].mxu0 %v66
    %v257 = vpop.f32.mrb[0].mxu0
    %v258 = vadd.f32 %v109, %v257
    %v259 = vpop.f32.mrb[0].mxu0
    %260 = vmatprep.mubr.f32.mxu0 0.0
    %261 = vmatmul.mubr.f32.gmra.mrb[0].mxu0 %v67
    %v262 = vpop.f32.mrb[0].mxu0
    %v263 = vadd.f32 %v109, %v262
    %v264 = vpop.f32.mrb[0].mxu0
    %265 = vmatprep.mubr.f32.mxu0 0.0
    %266 = vmatmul.mubr.f32.gmra.mrb[0].mxu0 %v68
    %v267 = vpop.f32.mrb[0].mxu0
    %v268 = vadd.f32 %v109, %v267
    %v269 = vpop.f32.mrb[0].mxu0
    %270 = vmatprep.mubr.f32.mxu0 0.0
    %271 = vmatmul.mubr.f32.gmra.mrb[0].mxu0 %v69
    %v272 = vpop.f32.mrb[0].mxu0
    %v273 = vadd.f32 %v109, %v272
    %v274 = vpop.f32.mrb[0].mxu0
    %275 = vmatprep.mubr.f32.mxu0 0.0
    %276 = vmatmul.mubr.f32.gmra.mrb[0].mxu0 %v70
    %v277 = vpop.f32.mrb[0].mxu0
    %v278 = vadd.f32 %v109, %v277
    %v279 = vpop.f32.mrb[0].mxu0
    %280 = vmatprep.mubr.f32.mxu0 0.0
    %281 = vmatmul.mubr.f32.gmra.mrb[0].mxu0 %v71
    %v282 = vpop.f32.mrb[0].mxu0
    %v283 = vadd.f32 %v109, %v282
    %v284 = vpop.f32.mrb[0].mxu0
    %285 = vmatprep.mubr.f32.mxu0 0.0
    %286 = vmatmul.mubr.f32.gmra.mrb[0].mxu0 %v72
    %v287 = vpop.f32.mrb[0].mxu0
    %v288 = vadd.f32 %v109, %v287
    %v289 = vpop.f32.mrb[0].mxu0
    %290 = vmatprep.mubr.f32.mxu0 0.0
    %291 = vmatmul.mubr.f32.gmra.mrb[0].mxu0 %v73
    %v292 = vpop.f32.mrb[0].mxu0
    %v293 = vadd.f32 %v109, %v292
    %v294 = vpop.f32.mrb[0].mxu0
    %295 = vmatprep.mubr.f32.mxu0 0.0
    %296 = vmatmul.mubr.f32.gmra.mrb[0].mxu0 %v74
    %v297 = vpop.f32.mrb[0].mxu0
    %v298 = vadd.f32 %v109, %v297
    %v299 = vpop.f32.mrb[0].mxu0
    %300 = vmatprep.mubr.f32.mxu0 0.0
    %301 = vmatmul.mubr.f32.gmra.mrb[0].mxu0 %v75
    %v302 = vpop.f32.mrb[0].mxu0
    %v303 = vadd.f32 %v109, %v302
    %v304 = vpop.f32.mrb[0].mxu0
    %305 = vmatprep.mubr.f32.mxu0 0.0
    %306 = vmatmul.mubr.f32.gmra.mrb[0].mxu0 %v76
    %v307 = vpop.f32.mrb[0].mxu0
    %v308 = vadd.f32 %v109, %v307
    %v309 = vpop.f32.mrb[0].mxu0
    %310 = vmatprep.mubr.f32.mxu0 0.0
    %311 = vmatmul.mubr.f32.gmra.mrb[0].mxu0 %v77
    %v312 = vpop.f32.mrb[0].mxu0
    %v313 = vadd.f32 %v109, %v312
    %v314 = vpop.f32.mrb[0].mxu0
    %315 = vmatprep.mubr.f32.mxu0 0.0
    %316 = vmatmul.mubr.f32.gmra.mrb[0].mxu0 %v78
    %v317 = vpop.f32.mrb[0].mxu0
    %v318 = vadd.f32 %v109, %v317
    %v319 = vpop.f32.mrb[0].mxu0
    %320 = vmatprep.mubr.f32.mxu0 0.0
    %321 = vmatmul.mubr.f32.gmra.mrb[0].mxu0 %v79
    %v322 = vpop.f32.mrb[0].mxu0
    %v323 = vadd.f32 %v109, %v322
    %v324 = vpop.f32.mrb[0].mxu0
    %325 = vmatprep.mubr.f32.mxu0 0.0
    %326 = vmatmul.mubr.f32.gmra.mrb[0].mxu0 %v80
    %v327 = vpop.f32.mrb[0].mxu0
    %v328 = vadd.f32 %v109, %v327
    %v329 = vpop.f32.mrb[0].mxu0
    %330 = vmatprep.mubr.f32.mxu0 0.0
    %331 = vmatmul.mubr.f32.gmra.mrb[0].mxu0 %v81
    %v332 = vpop.f32.mrb[0].mxu0
    %v333 = vadd.f32 %v109, %v332
    %v334 = vpop.f32.mrb[0].mxu0
    %335 = vmatprep.mubr.f32.mxu0 0.0
    %336 = vmatmul.mubr.f32.gmra.mrb[0].mxu0 %v82
    %v337 = vpop.f32.mrb[0].mxu0
    %v338 = vadd.f32 %v109, %v337
    %v339 = vpop.f32.mrb[0].mxu0
    %340 = vmatprep.mubr.f32.mxu0 0.0
    %341 = vmatmul.mubr.f32.gmra.mrb[0].mxu0 %v83
    %v342 = vpop.f32.mrb[0].mxu0
    %v343 = vadd.f32 %v109, %v342
    %v344 = vpop.f32.mrb[0].mxu0
    %345 = vmatprep.mubr.f32.mxu0 0.0
    %346 = vmatmul.mubr.f32.gmra.mrb[0].mxu0 %v84
    %v347 = vpop.f32.mrb[0].mxu0
    %v348 = vadd.f32 %v109, %v347
    %v349 = vpop.f32.mrb[0].mxu0
    %350 = vmatprep.mubr.f32.mxu0 0.0
    %351 = vmatmul.mubr.f32.gmra.mrb[0].mxu0 %v85
    %v352 = vpop.f32.mrb[0].mxu0
    %v353 = vadd.f32 %v109, %v352
    %v354 = vpop.f32.mrb[0].mxu0
    %355 = vmatprep.mubr.f32.mxu0 0.0
    %356 = vmatmul.mubr.f32.gmra.mrb[0].mxu0 %v86
    %v357 = vpop.f32.mrb[0].mxu0
    %v358 = vadd.f32 %v109, %v357
    %v359 = vpop.f32.mrb[0].mxu0
    %360 = vmatprep.mubr.f32.mxu0 0.0
    %361 = vmatmul.mubr.f32.gmra.mrb[0].mxu0 %v87
    %v362 = vpop.f32.mrb[0].mxu0
    %v363 = vadd.f32 %v109, %v362
    %v364 = vpop.f32.mrb[0].mxu0
    %365 = vdwg.mxu0
    %v366 = vmax.f32 %v178, 0.0
    %v367 = vmax.f32 %v183, 0.0
    %v368 = vmax.f32 %v188, 0.0
    %v369 = vmax.f32 %v193, 0.0
    %v370 = vmax.f32 %v198, 0.0
    %v371 = vmax.f32 %v203, 0.0
    %v372 = vmax.f32 %v208, 0.0
    %v373 = vmax.f32 %v213, 0.0
    %v374 = vmax.f32 %v218, 0.0
    %v375 = vmax.f32 %v223, 0.0
    %v376 = vmax.f32 %v228, 0.0
    %v377 = vmax.f32 %v233, 0.0
    %v378 = vmax.f32 %v238, 0.0
    %v379 = vmax.f32 %v243, 0.0
    %v380 = vmax.f32 %v248, 0.0
    %v381 = vmax.f32 %v253, 0.0
    %v382 = vmax.f32 %v258, 0.0
    %v383 = vmax.f32 %v263, 0.0
    %v384 = vmax.f32 %v268, 0.0
    %v385 = vmax.f32 %v273, 0.0
    %v386 = vmax.f32 %v278, 0.0
    %v387 = vmax.f32 %v283, 0.0
    %v388 = vmax.f32 %v288, 0.0
    %v389 = vmax.f32 %v293, 0.0
    %v390 = vmax.f32 %v298, 0.0
    %v391 = vmax.f32 %v303, 0.0
    %v392 = vmax.f32 %v308, 0.0
    %v393 = vmax.f32 %v313, 0.0
    %v394 = vmax.f32 %v318, 0.0
    %v395 = vmax.f32 %v323, 0.0
    %v396 = vmax.f32 %v328, 0.0
    %v397 = vmax.f32 %v333, 0.0
    %v398 = vmax.f32 %v338, 0.0
    %v399 = vmax.f32 %v343, 0.0
    %v400 = vmax.f32 %v348, 0.0
    %v401 = vmax.f32 %v353, 0.0
    %v402 = vmax.f32 %v358, 0.0
    %v403 = vmax.f32 %v363, 0.0
    %v404 = vld [vmem:[%s3] sm:$0x1]
    %v406 = vlaneseq
    %v407 = vshrl.u32 %v406, 7
    %v408 = vsub.s32 0, %v407
    %v409 = vrot.slane %v404, %v408
    %v411 = vmul.f32 %v366, %v409
    %v412 = vmul.f32 %v367, %v409
    %v413 = vmul.f32 %v368, %v409
    %v414 = vmul.f32 %v369, %v409
    %v415 = vmul.f32 %v370, %v409
    %v416 = vmul.f32 %v371, %v409
    %v417 = vmul.f32 %v372, %v409
    %v418 = vmul.f32 %v373, %v409
    %v419 = vmul.f32 %v374, %v409
    %v420 = vmul.f32 %v375, %v409
    %v421 = vmul.f32 %v376, %v409
    %v422 = vmul.f32 %v377, %v409
    %v423 = vmul.f32 %v378, %v409
    %v424 = vmul.f32 %v379, %v409
    %v425 = vmul.f32 %v380, %v409
    %v426 = vmul.f32 %v381, %v409
    %v427 = vmul.f32 %v382, %v409
    %v428 = vmul.f32 %v383, %v409
    %v429 = vmul.f32 %v384, %v409
    %v430 = vmul.f32 %v385, %v409
    %v431 = vmul.f32 %v386, %v409
    %v432 = vmul.f32 %v387, %v409
    %v433 = vmul.f32 %v388, %v409
    %v434 = vmul.f32 %v389, %v409
    %v435 = vmul.f32 %v390, %v409
    %v436 = vmul.f32 %v391, %v409
    %v437 = vmul.f32 %v392, %v409
    %v438 = vmul.f32 %v393, %v409
    %v439 = vmul.f32 %v394, %v409
    %v440 = vmul.f32 %v395, %v409
    %v441 = vmul.f32 %v396, %v409
    %v442 = vmul.f32 %v397, %v409
    %v443 = vmul.f32 %v398, %v409
    %v444 = vmul.f32 %v399, %v409
    %v445 = vmul.f32 %v400, %v409
    %v446 = vmul.f32 %v401, %v409
    %v447 = vmul.f32 %v402, %v409
    %v448 = vmul.f32 %v403, %v409
    %449 = vadd.xlane.f32.xlu0 %v411
    %v450 = vpop.xlane.xlu0 %449
    %451 = vadd.xlane.f32.xlu0 %v412
    %v452 = vpop.xlane.xlu0 %451
    %453 = vadd.xlane.f32.xlu0 %v413
    %v454 = vpop.xlane.xlu0 %453
    %455 = vadd.xlane.f32.xlu0 %v414
    %v456 = vpop.xlane.xlu0 %455
    %457 = vadd.xlane.f32.xlu0 %v415
    %v458 = vpop.xlane.xlu0 %457
    %459 = vadd.xlane.f32.xlu0 %v416
    %v460 = vpop.xlane.xlu0 %459
    %461 = vadd.xlane.f32.xlu0 %v417
    %v462 = vpop.xlane.xlu0 %461
    %463 = vadd.xlane.f32.xlu0 %v418
    %v464 = vpop.xlane.xlu0 %463
    %465 = vadd.xlane.f32.xlu0 %v419
    %v466 = vpop.xlane.xlu0 %465
    %467 = vadd.xlane.f32.xlu0 %v420
    %v468 = vpop.xlane.xlu0 %467
    %469 = vadd.xlane.f32.xlu0 %v421
    %v470 = vpop.xlane.xlu0 %469
    %471 = vadd.xlane.f32.xlu0 %v422
    %v472 = vpop.xlane.xlu0 %471
    %473 = vadd.xlane.f32.xlu0 %v423
    %v474 = vpop.xlane.xlu0 %473
    %475 = vadd.xlane.f32.xlu0 %v424
    %v476 = vpop.xlane.xlu0 %475
    %477 = vadd.xlane.f32.xlu0 %v425
    %v478 = vpop.xlane.xlu0 %477
    %479 = vadd.xlane.f32.xlu0 %v426
    %v480 = vpop.xlane.xlu0 %479
    %481 = vadd.xlane.f32.xlu0 %v427
    %v482 = vpop.xlane.xlu0 %481
    %483 = vadd.xlane.f32.xlu0 %v428
    %v484 = vpop.xlane.xlu0 %483
    %485 = vadd.xlane.f32.xlu0 %v429
    %v486 = vpop.xlane.xlu0 %485
    %487 = vadd.xlane.f32.xlu0 %v430
    %v488 = vpop.xlane.xlu0 %487
    %489 = vadd.xlane.f32.xlu0 %v431
    %v490 = vpop.xlane.xlu0 %489
    %491 = vadd.xlane.f32.xlu0 %v432
    %v492 = vpop.xlane.xlu0 %491
    %493 = vadd.xlane.f32.xlu0 %v433
    %v494 = vpop.xlane.xlu0 %493
    %495 = vadd.xlane.f32.xlu0 %v434
    %v496 = vpop.xlane.xlu0 %495
    %497 = vadd.xlane.f32.xlu0 %v435
    %v498 = vpop.xlane.xlu0 %497
    %499 = vadd.xlane.f32.xlu0 %v436
    %v500 = vpop.xlane.xlu0 %499
    %501 = vadd.xlane.f32.xlu0 %v437
    %v502 = vpop.xlane.xlu0 %501
    %503 = vadd.xlane.f32.xlu0 %v438
    %v504 = vpop.xlane.xlu0 %503
    %505 = vadd.xlane.f32.xlu0 %v439
    %v506 = vpop.xlane.xlu0 %505
    %507 = vadd.xlane.f32.xlu0 %v440
    %v508 = vpop.xlane.xlu0 %507
    %509 = vadd.xlane.f32.xlu0 %v441
    %v510 = vpop.xlane.xlu0 %509
    %511 = vadd.xlane.f32.xlu0 %v442
    %v512 = vpop.xlane.xlu0 %511
    %513 = vadd.xlane.f32.xlu0 %v443
    %v514 = vpop.xlane.xlu0 %513
    %515 = vadd.xlane.f32.xlu0 %v444
    %v516 = vpop.xlane.xlu0 %515
    %517 = vadd.xlane.f32.xlu0 %v445
    %v518 = vpop.xlane.xlu0 %517
    %519 = vadd.xlane.f32.xlu0 %v446
    %v520 = vpop.xlane.xlu0 %519
    %521 = vadd.xlane.f32.xlu0 %v447
    %v522 = vpop.xlane.xlu0 %521
    %vm523 = vcmask 1043456
    %v524 = vsel %vm523, %v448, 0.0
    %525 = vadd.xlane.f32.xlu0 %v524
    %v526 = vpop.xlane.xlu0 %525
    %v527 = vld [vmem:[#allocation2] sm:$0x1]
    %v529 = vlaneseq
    %v530 = vshrl.u32 %v529, 7
    %v531 = vsub.s32 0, %v530
    %v532 = vrot.slane %v527, %v531
    %v534 = vadd.f32 %v450, %v532
    %v535 = vadd.f32 %v452, %v532
    %v536 = vadd.f32 %v454, %v532
    %v537 = vadd.f32 %v456, %v532
    %v538 = vadd.f32 %v458, %v532
    %v539 = vadd.f32 %v460, %v532
    %v540 = vadd.f32 %v462, %v532
    %v541 = vadd.f32 %v464, %v532
    %v542 = vadd.f32 %v466, %v532
    %v543 = vadd.f32 %v468, %v532
    %v544 = vadd.f32 %v470, %v532
    %v545 = vadd.f32 %v472, %v532
    %v546 = vadd.f32 %v474, %v532
    %v547 = vadd.f32 %v476, %v532
    %v548 = vadd.f32 %v478, %v532
    %v549 = vadd.f32 %v480, %v532
    %v550 = vadd.f32 %v482, %v532
    %v551 = vadd.f32 %v484, %v532
    %v552 = vadd.f32 %v486, %v532
    %v553 = vadd.f32 %v488, %v532
    %v554 = vadd.f32 %v490, %v532
    %v555 = vadd.f32 %v492, %v532
    %v556 = vadd.f32 %v494, %v532
    %v557 = vadd.f32 %v496, %v532
    %v558 = vadd.f32 %v498, %v532
    %v559 = vadd.f32 %v500, %v532
    %v560 = vadd.f32 %v502, %v532
    %v561 = vadd.f32 %v504, %v532
    %v562 = vadd.f32 %v506, %v532
    %v563 = vadd.f32 %v508, %v532
    %v564 = vadd.f32 %v510, %v532
    %v565 = vadd.f32 %v512, %v532
    %v566 = vadd.f32 %v514, %v532
    %v567 = vadd.f32 %v516, %v532
    %v568 = vadd.f32 %v518, %v532
    %v569 = vadd.f32 %v520, %v532
    %v570 = vadd.f32 %v522, %v532
    %v571 = vadd.f32 %v526, %v532
    %vm572 = vcmask 7168
    %573 = vst.msk [vmem:[%s5] sm:$0xff] %vm572, %v534
    %574 = vst.msk [vmem:[%s5 + $0x8] sm:$0xff] %vm572, %v535
    %575 = vst.msk [vmem:[%s5 + $0x10] sm:$0xff] %vm572, %v536
    %576 = vst.msk [vmem:[%s5 + $0x18] sm:$0xff] %vm572, %v537
    %577 = vst.msk [vmem:[%s5 + $0x20] sm:$0xff] %vm572, %v538
    %578 = vst.msk [vmem:[%s5 + $0x28] sm:$0xff] %vm572, %v539
    %579 = vst.msk [vmem:[%s5 + $0x30] sm:$0xff] %vm572, %v540
    %580 = vst.msk [vmem:[%s5 + $0x38] sm:$0xff] %vm572, %v541
    %581 = vst.msk [vmem:[%s5 + $0x40] sm:$0xff] %vm572, %v542
    %582 = vst.msk [vmem:[%s5 + $0x48] sm:$0xff] %vm572, %v543
    %583 = vst.msk [vmem:[%s5 + $0x50] sm:$0xff] %vm572, %v544
    %584 = vst.msk [vmem:[%s5 + $0x58] sm:$0xff] %vm572, %v545
    %585 = vst.msk [vmem:[%s5 + $0x60] sm:$0xff] %vm572, %v546
    %586 = vst.msk [vmem:[%s5 + $0x68] sm:$0xff] %vm572, %v547
    %587 = vst.msk [vmem:[%s5 + $0x70] sm:$0xff] %vm572, %v548
    %588 = vst.msk [vmem:[%s5 + $0x78] sm:$0xff] %vm572, %v549
    %589 = vst.msk [vmem:[%s5 + $0x80] sm:$0xff] %vm572, %v550
    %590 = vst.msk [vmem:[%s5 + $0x88] sm:$0xff] %vm572, %v551
    %591 = vst.msk [vmem:[%s5 + $0x90] sm:$0xff] %vm572, %v552
    %592 = vst.msk [vmem:[%s5 + $0x98] sm:$0xff] %vm572, %v553
    %593 = vst.msk [vmem:[%s5 + $0xa0] sm:$0xff] %vm572, %v554
    %594 = vst.msk [vmem:[%s5 + $0xa8] sm:$0xff] %vm572, %v555
    %595 = vst.msk [vmem:[%s5 + $0xb0] sm:$0xff] %vm572, %v556
    %596 = vst.msk [vmem:[%s5 + $0xb8] sm:$0xff] %vm572, %v557
    %597 = vst.msk [vmem:[%s5 + $0xc0] sm:$0xff] %vm572, %v558
    %598 = vst.msk [vmem:[%s5 + $0xc8] sm:$0xff] %vm572, %v559
    %599 = vst.msk [vmem:[%s5 + $0xd0] sm:$0xff] %vm572, %v560
    %600 = vst.msk [vmem:[%s5 + $0xd8] sm:$0xff] %vm572, %v561
    %601 = vst.msk [vmem:[%s5 + $0xe0] sm:$0xff] %vm572, %v562
    %602 = vst.msk [vmem:[%s5 + $0xe8] sm:$0xff] %vm572, %v563
    %603 = vst.msk [vmem:[%s5 + $0xf0] sm:$0xff] %vm572, %v564
    %604 = vst.msk [vmem:[%s5 + $0xf8] sm:$0xff] %vm572, %v565
    %605 = vst.msk [vmem:[%s5 + $0x100] sm:$0xff] %vm572, %v566
    %606 = vst.msk [vmem:[%s5 + $0x108] sm:$0xff] %vm572, %v567
    %607 = vst.msk [vmem:[%s5 + $0x110] sm:$0xff] %vm572, %v568
    %608 = vst.msk [vmem:[%s5 + $0x118] sm:$0xff] %vm572, %v569
    %609 = vst.msk [vmem:[%s5 + $0x120] sm:$0xff] %vm572, %v570
    %vm610 = vcmask 3072
    %611 = vst.msk [vmem:[%s5 + $0x128] sm:$0xf] %vm610, %v571
    // Predicated region
    $region30: #{tpu_custom_call.1} parent=1 // pred_check
      _
    $region31: #{tpu_custom_call.1} parent=1 // pred_check_branch
      %613 = sbr.rel (0) target = $region33
    $region32: #{tpu_custom_call.1} parent=1 // pred_region
      _
    $region33: #{tpu_custom_call.1} parent=1 // pred_fallthru
      _
    // Predicated region
    $region34: #{tpu_custom_call.1} parent=1 // pred_check
      _
    $region35: #{tpu_custom_call.1} parent=1 // pred_check_branch
      %615 = sbr.rel (0) target = $region37
    $region36: #{tpu_custom_call.1} parent=1 // pred_region
      _
    $region37: #{tpu_custom_call.1} parent=1 // pred_fallthru
      _
    %616 = vsyncpa [#allocation4], 1
    %617 = vsyncpa [#allocation6], 1

// kernel: tpu_custom_call.1
$region0: #{tpu_custom_call.1}
  #allocation0 [shape = 'u32[]', space=smem, size = 0x4, offset = 0x4, fixed_abs, tag = 'smem constant byte address 0x4 - core index']
  #allocation1 [shape = 'u32[144,128]{1,0:T(1,128)}', space=vmem, size = 0x12000, scoped, tag = 'internal scratch']
  #allocation2 [shape = 'f32[1,1]{1,0:T(1,128)S(1)}', space=vmem, size = 0x200, scoped, tag = 'scoped memory for tpu_custom_call.1']
  %s0 = inlined_call_operand.hbm [shape: f32[300,128], index: 0, kind: input, shape index: {}]
  %s1 = inlined_call_operand.hbm [shape: f32[128,128], index: 1, kind: input, shape index: {}]
  %s2 = inlined_call_operand.vmem [shape: f32[1,128], index: 2, kind: input, shape index: {}]
  %s3 = inlined_call_operand.vmem [shape: f32[1,128], index: 3, kind: input, shape index: {}]
  %s4 = inlined_call_operand.<no memory space> [shape: f32[1,1], index: 4, kind: input, shape index: {}]
  %s5 = inlined_call_operand.vmem [shape: f32[300,1], index: 5, kind: output, shape index: {}]
  %s6 = sld [smem:[#allocation0]]
  $region38: #{tpu_custom_call.1} parent=0
    _
  %s8 = ssub.s32 1, %s6
  %s9 = scalar_select 0, %s8, %s6
  %v10 = vstv %s4
  %11 = vst [vmem:[#allocation2] sm:$0x1] %v10
  $region1: #{tpu_custom_call.1} parent=0
    #allocation3 [shape = 'u8[155648]{0}', space=vmem, size = 0x26000, scoped, tag = 'input window, operand 0, single buffered']
    #allocation4 [shape = 's32[1]{0}', space=sflag, size = 0x4, scoped, tag = 'scoped memory for tpu_custom_call.1']
    #allocation5 [shape = 'u8[65536]{0}', space=vmem, size = 0x10000, scoped, tag = 'input window, operand 1, single buffered']
    #allocation6 [shape = 's32[1]{0}', space=sflag, size = 0x4, scoped, tag = 'scoped memory for tpu_custom_call.1']
    %12 = vsyncpa [#allocation4], 0
    %13 = vsyncpa [#allocation6], 0
    // Predicated region
    $region2: #{tpu_custom_call.1} parent=1 // pred_check
      _
    $region3: #{tpu_custom_call.1} parent=1 // pred_check_branch
      %15 = sbr.rel (0) target = $region5
    $region4: #{tpu_custom_call.1} parent=1 // pred_region
      %s17 = ssub.s32 4864, 4864
      %18 = vsyncadd [#allocation4], %s17
      %s19 = sshll.u32 [#allocation3], 4
      %s20 = int_to_ptr.vmem [resolvable:$true] %s19
      %25 = dma.hbm_to_vmem [thread:$0]  %s0, 4864, %s20, [#allocation4], 128, 128, 8
    $region5: #{tpu_custom_call.1} parent=1 // pred_fallthru
      _
    // Predicated region
    $region6: #{tpu_custom_call.1} parent=1 // pred_check
      _
    $region7: #{tpu_custom_call.1} parent=1 // pred_check_branch
      %27 = sbr.rel (0) target = $region9
    $region8: #{tpu_custom_call.1} parent=1 // pred_region
      %s29 = ssub.s32 2048, 2048
      %30 = vsyncadd [#allocation6], %s29
      %s31 = sshll.u32 [#allocation5], 4
      %s32 = int_to_ptr.vmem [resolvable:$true] %s31
      %37 = dma.hbm_to_vmem [thread:$0]  %s1, 2048, %s32, [#allocation6], 128, 128, 8
    $region9: #{tpu_custom_call.1} parent=1 // pred_fallthru
      _
    // Predicated region
    $region10: #{tpu_custom_call.1} parent=1 // pred_check
      _
    $region11: #{tpu_custom_call.1} parent=1 // pred_check_branch
      %39 = sbr.rel (0) target = $region13
    $region12: #{tpu_custom_call.1} parent=1 // pred_region
      _
    $region13: #{tpu_custom_call.1} parent=1 // pred_fallthru
      _
    // Predicated region
    $region14: #{tpu_custom_call.1} parent=1 // pred_check
      _
    $region15: #{tpu_custom_call.1} parent=1 // pred_check_branch
      %41 = sbr.rel (0) target = $region17
    $region16: #{tpu_custom_call.1} parent=1 // pred_region
      _
    $region17: #{tpu_custom_call.1} parent=1 // pred_fallthru
      _
    // Predicated region
    $region18: #{tpu_custom_call.1} parent=1 // pred_check
      _
    $region19: #{tpu_custom_call.1} parent=1 // pred_check_branch
      %43 = sbr.rel (0) target = $region21
    $region20: #{tpu_custom_call.1} parent=1 // pred_region
      _
    $region21: #{tpu_custom_call.1} parent=1 // pred_fallthru
      _
    // Predicated region
    $region22: #{tpu_custom_call.1} parent=1 // pred_check
      _
    $region23: #{tpu_custom_call.1} parent=1 // pred_check_branch
      %45 = sbr.rel (0) target = $region25
    $region24: #{tpu_custom_call.1} parent=1 // pred_region
      %46 = dma.done [#allocation4], 4864
    $region25: #{tpu_custom_call.1} parent=1 // pred_fallthru
      _
    // Predicated region
    $region26: #{tpu_custom_call.1} parent=1 // pred_check
      _
    $region27: #{tpu_custom_call.1} parent=1 // pred_check_branch
      %48 = sbr.rel (0) target = $region29
    $region28: #{tpu_custom_call.1} parent=1 // pred_region
      %49 = dma.done [#allocation6], 2048
    $region29: #{tpu_custom_call.1} parent=1 // pred_fallthru
      _
    %v50 = vld [vmem:[#allocation3] sm:$0xff]
    %v51 = vld [vmem:[#allocation3 + $0x8] sm:$0xff]
    %v52 = vld [vmem:[#allocation3 + $0x10] sm:$0xff]
    %v53 = vld [vmem:[#allocation3 + $0x18] sm:$0xff]
    %v54 = vld [vmem:[#allocation3 + $0x20] sm:$0xff]
    %v55 = vld [vmem:[#allocation3 + $0x28] sm:$0xff]
    %v56 = vld [vmem:[#allocation3 + $0x30] sm:$0xff]
    %v57 = vld [vmem:[#allocation3 + $0x38] sm:$0xff]
    %v58 = vld [vmem:[#allocation3 + $0x40] sm:$0xff]
    %v59 = vld [vmem:[#allocation3 + $0x48] sm:$0xff]
    %v60 = vld [vmem:[#allocation3 + $0x50] sm:$0xff]
    %v61 = vld [vmem:[#allocation3 + $0x58] sm:$0xff]
    %v62 = vld [vmem:[#allocation3 + $0x60] sm:$0xff]
    %v63 = vld [vmem:[#allocation3 + $0x68] sm:$0xff]
    %v64 = vld [vmem:[#allocation3 + $0x70] sm:$0xff]
    %v65 = vld [vmem:[#allocation3 + $0x78] sm:$0xff]
    %v66 = vld [vmem:[#allocation3 + $0x80] sm:$0xff]
    %v67 = vld [vmem:[#allocation3 + $0x88] sm:$0xff]
    %v68 = vld [vmem:[#allocation3 + $0x90] sm:$0xff]
    %v69 = vld [vmem:[#allocation3 + $0x98] sm:$0xff]
    %v70 = vld [vmem:[#allocation3 + $0xa0] sm:$0xff]
    %v71 = vld [vmem:[#allocation3 + $0xa8] sm:$0xff]
    %v72 = vld [vmem:[#allocation3 + $0xb0] sm:$0xff]
    %v73 = vld [vmem:[#allocation3 + $0xb8] sm:$0xff]
    %v74 = vld [vmem:[#allocation3 + $0xc0] sm:$0xff]
    %v75 = vld [vmem:[#allocation3 + $0xc8] sm:$0xff]
    %v76 = vld [vmem:[#allocation3 + $0xd0] sm:$0xff]
    %v77 = vld [vmem:[#allocation3 + $0xd8] sm:$0xff]
    %v78 = vld [vmem:[#allocation3 + $0xe0] sm:$0xff]
    %v79 = vld [vmem:[#allocation3 + $0xe8] sm:$0xff]
    %v80 = vld [vmem:[#allocation3 + $0xf0] sm:$0xff]
    %v81 = vld [vmem:[#allocation3 + $0xf8] sm:$0xff]
    %v82 = vld [vmem:[#allocation3 + $0x100] sm:$0xff]
    %v83 = vld [vmem:[#allocation3 + $0x108] sm:$0xff]
    %v84 = vld [vmem:[#allocation3 + $0x110] sm:$0xff]
    %v85 = vld [vmem:[#allocation3 + $0x118] sm:$0xff]
    %v86 = vld [vmem:[#allocation3 + $0x120] sm:$0xff]
    %v87 = vld [vmem:[#allocation3 + $0x128] sm:$0xf]
    %v88 = vld [vmem:[#allocation5] sm:$0xff]
    %v89 = vld [vmem:[#allocation5 + $0x8] sm:$0xff]
    %v90 = vld [vmem:[#allocation5 + $0x10] sm:$0xff]
    %v91 = vld [vmem:[#allocation5 + $0x18] sm:$0xff]
    %v92 = vld [vmem:[#allocation5 + $0x20] sm:$0xff]
    %v93 = vld [vmem:[#allocation5 + $0x28] sm:$0xff]
    %v94 = vld [vmem:[#allocation5 + $0x30] sm:$0xff]
    %v95 = vld [vmem:[#allocation5 + $0x38] sm:$0xff]
    %v96 = vld [vmem:[#allocation5 + $0x40] sm:$0xff]
    %v97 = vld [vmem:[#allocation5 + $0x48] sm:$0xff]
    %v98 = vld [vmem:[#allocation5 + $0x50] sm:$0xff]
    %v99 = vld [vmem:[#allocation5 + $0x58] sm:$0xff]
    %v100 = vld [vmem:[#allocation5 + $0x60] sm:$0xff]
    %v101 = vld [vmem:[#allocation5 + $0x68] sm:$0xff]
    %v102 = vld [vmem:[#allocation5 + $0x70] sm:$0xff]
    %v103 = vld [vmem:[#allocation5 + $0x78] sm:$0xff]
    %v104 = vld [vmem:[%s2] sm:$0x1]
    %v106 = vlaneseq
    %v107 = vshrl.u32 %v106, 7
    %v108 = vsub.s32 0, %v107
    %v109 = vrot.slane %v104, %v108
    %111 = vmatprep.subr.mxu0 0.0
    %112 = vmatpush1.msra.mxu0 %v88
    %113 = vmatprep.subr.mxu0 0.0
    %114 = vmatpush1.msra.mxu0 %v89
    %115 = vmatprep.subr.mxu0 0.0
    %116 = vmatpush1.msra.mxu0 %v90
    %117 = vmatprep.subr.mxu0 0.0
    %118 = vmatpush1.msra.mxu0 %v91
    %119 = vmatprep.subr.mxu0 0.0
    %120 = vmatpush1.msra.mxu0 %v92
    %121 = vmatprep.subr.mxu0 0.0
    %122 = vmatpush1.msra.mxu0 %v93
    %123 = vmatprep.subr.mxu0 0.0
    %124 = vmatpush1.msra.mxu0 %v94
    %125 = vmatprep.subr.mxu0 0.0
    %126 = vmatpush1.msra.mxu0 %v95
    %127 = vmatprep.subr.mxu0 0.0
    %128 = vmatpush1.msra.mxu0 %v96
    %129 = vmatprep.subr.mxu0 0.0
    %130 = vmatpush1.msra.mxu0 %v97
    %131 = vmatprep.subr.mxu0 0.0
    %132 = vmatpush1.msra.mxu0 %v98
    %133 = vmatprep.subr.mxu0 0.0
    %134 = vmatpush1.msra.mxu0 %v99
    %135 = vmatprep.subr.mxu0 0.0
    %136 = vmatpush1.msra.mxu0 %v100
    %137 = vmatprep.subr.mxu0 0.0
    %138 = vmatpush1.msra.mxu0 %v101
    %139 = vmatprep.subr.mxu0 0.0
    %140 = vmatpush1.msra.mxu0 %v102
    %141 = vmatprep.subr.mxu0 0.0
    %142 = vmatpush1.msra.mxu0 %v103
    %143 = vmatprep.subr.mxu0 0.0
    %144 = vmatpush1.msra.mxu0 0.0
    %145 = vmatprep.subr.mxu0 0.0
    %146 = vmatpush1.msra.mxu0 0.0
    %147 = vmatprep.subr.mxu0 0.0
    %148 = vmatpush1.msra.mxu0 0.0
    %149 = vmatprep.subr.mxu0 0.0
    %150 = vmatpush1.msra.mxu0 0.0
    %151 = vmatprep.subr.mxu0 0.0
    %152 = vmatpush1.msra.mxu0 0.0
    %153 = vmatprep.subr.mxu0 0.0
    %154 = vmatpush1.msra.mxu0 0.0
    %155 = vmatprep.subr.mxu0 0.0
    %156 = vmatpush1.msra.mxu0 0.0
    %157 = vmatprep.subr.mxu0 0.0
    %158 = vmatpush1.msra.mxu0 0.0
    %159 = vmatprep.subr.mxu0 0.0
    %160 = vmatpush1.msra.mxu0 0.0
    %161 = vmatprep.subr.mxu0 0.0
    %162 = vmatpush1.msra.mxu0 0.0
    %163 = vmatprep.subr.mxu0 0.0
    %164 = vmatpush1.msra.mxu0 0.0
    %165 = vmatprep.subr.mxu0 0.0
    %166 = vmatpush1.msra.mxu0 0.0
    %167 = vmatprep.subr.mxu0 0.0
    %168 = vmatpush1.msra.mxu0 0.0
    %169 = vmatprep.subr.mxu0 0.0
    %170 = vmatpush1.msra.mxu0 0.0
    %171 = vmatprep.subr.mxu0 0.0
    %172 = vmatpush1.msra.mxu0 0.0
    %173 = vmatprep.subr.mxu0 0.0
    %174 = vmatpush1.msra.mxu0 0.0
    %175 = vmatprep.mubr.f32.mxu0 0.0
    %176 = vmatmul.mubr.f32.gmra.mrb[0].mxu0 %v50
    %v177 = vpop.f32.mrb[0].mxu0
    %v178 = vadd.f32 %v109, %v177
    %v179 = vpop.f32.mrb[0].mxu0
    %180 = vmatprep.mubr.f32.mxu0 0.0
    %181 = vmatmul.mubr.f32.gmra.mrb[0].mxu0 %v51
    %v182 = vpop.f32.mrb[0].mxu0
    %v183 = vadd.f32 %v109, %v182
    %v184 = vpop.f32.mrb[0].mxu0
    %185 = vmatprep.mubr.f32.mxu0 0.0
    %186 = vmatmul.mubr.f32.gmra.mrb[0].mxu0 %v52
    %v187 = vpop.f32.mrb[0].mxu0
    %v188 = vadd.f32 %v109, %v187
    %v189 = vpop.f32.mrb[0].mxu0
    %190 = vmatprep.mubr.f32.mxu0 0.0
    %191 = vmatmul.mubr.f32.gmra.mrb[0].mxu0 %v53
    %v192 = vpop.f32.mrb[0].mxu0
    %v193 = vadd.f32 %v109, %v192
    %v194 = vpop.f32.mrb[0].mxu0
    %195 = vmatprep.mubr.f32.mxu0 0.0
    %196 = vmatmul.mubr.f32.gmra.mrb[0].mxu0 %v54
    %v197 = vpop.f32.mrb[0].mxu0
    %v198 = vadd.f32 %v109, %v197
    %v199 = vpop.f32.mrb[0].mxu0
    %200 = vmatprep.mubr.f32.mxu0 0.0
    %201 = vmatmul.mubr.f32.gmra.mrb[0].mxu0 %v55
    %v202 = vpop.f32.mrb[0].mxu0
    %v203 = vadd.f32 %v109, %v202
    %v204 = vpop.f32.mrb[0].mxu0
    %205 = vmatprep.mubr.f32.mxu0 0.0
    %206 = vmatmul.mubr.f32.gmra.mrb[0].mxu0 %v56
    %v207 = vpop.f32.mrb[0].mxu0
    %v208 = vadd.f32 %v109, %v207
    %v209 = vpop.f32.mrb[0].mxu0
    %210 = vmatprep.mubr.f32.mxu0 0.0
    %211 = vmatmul.mubr.f32.gmra.mrb[0].mxu0 %v57
    %v212 = vpop.f32.mrb[0].mxu0
    %v213 = vadd.f32 %v109, %v212
    %v214 = vpop.f32.mrb[0].mxu0
    %215 = vmatprep.mubr.f32.mxu0 0.0
    %216 = vmatmul.mubr.f32.gmra.mrb[0].mxu0 %v58
    %v217 = vpop.f32.mrb[0].mxu0
    %v218 = vadd.f32 %v109, %v217
    %v219 = vpop.f32.mrb[0].mxu0
    %220 = vmatprep.mubr.f32.mxu0 0.0
    %221 = vmatmul.mubr.f32.gmra.mrb[0].mxu0 %v59
    %v222 = vpop.f32.mrb[0].mxu0
    %v223 = vadd.f32 %v109, %v222
    %v224 = vpop.f32.mrb[0].mxu0
    %225 = vmatprep.mubr.f32.mxu0 0.0
    %226 = vmatmul.mubr.f32.gmra.mrb[0].mxu0 %v60
    %v227 = vpop.f32.mrb[0].mxu0
    %v228 = vadd.f32 %v109, %v227
    %v229 = vpop.f32.mrb[0].mxu0
    %230 = vmatprep.mubr.f32.mxu0 0.0
    %231 = vmatmul.mubr.f32.gmra.mrb[0].mxu0 %v61
    %v232 = vpop.f32.mrb[0].mxu0
    %v233 = vadd.f32 %v109, %v232
    %v234 = vpop.f32.mrb[0].mxu0
    %235 = vmatprep.mubr.f32.mxu0 0.0
    %236 = vmatmul.mubr.f32.gmra.mrb[0].mxu0 %v62
    %v237 = vpop.f32.mrb[0].mxu0
    %v238 = vadd.f32 %v109, %v237
    %v239 = vpop.f32.mrb[0].mxu0
    %240 = vmatprep.mubr.f32.mxu0 0.0
    %241 = vmatmul.mubr.f32.gmra.mrb[0].mxu0 %v63
    %v242 = vpop.f32.mrb[0].mxu0
    %v243 = vadd.f32 %v109, %v242
    %v244 = vpop.f32.mrb[0].mxu0
    %245 = vmatprep.mubr.f32.mxu0 0.0
    %246 = vmatmul.mubr.f32.gmra.mrb[0].mxu0 %v64
    %v247 = vpop.f32.mrb[0].mxu0
    %v248 = vadd.f32 %v109, %v247
    %v249 = vpop.f32.mrb[0].mxu0
    %250 = vmatprep.mubr.f32.mxu0 0.0
    %251 = vmatmul.mubr.f32.gmra.mrb[0].mxu0 %v65
    %v252 = vpop.f32.mrb[0].mxu0
    %v253 = vadd.f32 %v109, %v252
    %v254 = vpop.f32.mrb[0].mxu0
    %255 = vmatprep.mubr.f32.mxu0 0.0
    %256 = vmatmul.mubr.f32.gmra.mrb[0].mxu0 %v66
    %v257 = vpop.f32.mrb[0].mxu0
    %v258 = vadd.f32 %v109, %v257
    %v259 = vpop.f32.mrb[0].mxu0
    %260 = vmatprep.mubr.f32.mxu0 0.0
    %261 = vmatmul.mubr.f32.gmra.mrb[0].mxu0 %v67
    %v262 = vpop.f32.mrb[0].mxu0
    %v263 = vadd.f32 %v109, %v262
    %v264 = vpop.f32.mrb[0].mxu0
    %265 = vmatprep.mubr.f32.mxu0 0.0
    %266 = vmatmul.mubr.f32.gmra.mrb[0].mxu0 %v68
    %v267 = vpop.f32.mrb[0].mxu0
    %v268 = vadd.f32 %v109, %v267
    %v269 = vpop.f32.mrb[0].mxu0
    %270 = vmatprep.mubr.f32.mxu0 0.0
    %271 = vmatmul.mubr.f32.gmra.mrb[0].mxu0 %v69
    %v272 = vpop.f32.mrb[0].mxu0
    %v273 = vadd.f32 %v109, %v272
    %v274 = vpop.f32.mrb[0].mxu0
    %275 = vmatprep.mubr.f32.mxu0 0.0
    %276 = vmatmul.mubr.f32.gmra.mrb[0].mxu0 %v70
    %v277 = vpop.f32.mrb[0].mxu0
    %v278 = vadd.f32 %v109, %v277
    %v279 = vpop.f32.mrb[0].mxu0
    %280 = vmatprep.mubr.f32.mxu0 0.0
    %281 = vmatmul.mubr.f32.gmra.mrb[0].mxu0 %v71
    %v282 = vpop.f32.mrb[0].mxu0
    %v283 = vadd.f32 %v109, %v282
    %v284 = vpop.f32.mrb[0].mxu0
    %285 = vmatprep.mubr.f32.mxu0 0.0
    %286 = vmatmul.mubr.f32.gmra.mrb[0].mxu0 %v72
    %v287 = vpop.f32.mrb[0].mxu0
    %v288 = vadd.f32 %v109, %v287
    %v289 = vpop.f32.mrb[0].mxu0
    %290 = vmatprep.mubr.f32.mxu0 0.0
    %291 = vmatmul.mubr.f32.gmra.mrb[0].mxu0 %v73
    %v292 = vpop.f32.mrb[0].mxu0
    %v293 = vadd.f32 %v109, %v292
    %v294 = vpop.f32.mrb[0].mxu0
    %295 = vmatprep.mubr.f32.mxu0 0.0
    %296 = vmatmul.mubr.f32.gmra.mrb[0].mxu0 %v74
    %v297 = vpop.f32.mrb[0].mxu0
    %v298 = vadd.f32 %v109, %v297
    %v299 = vpop.f32.mrb[0].mxu0
    %300 = vmatprep.mubr.f32.mxu0 0.0
    %301 = vmatmul.mubr.f32.gmra.mrb[0].mxu0 %v75
    %v302 = vpop.f32.mrb[0].mxu0
    %v303 = vadd.f32 %v109, %v302
    %v304 = vpop.f32.mrb[0].mxu0
    %305 = vmatprep.mubr.f32.mxu0 0.0
    %306 = vmatmul.mubr.f32.gmra.mrb[0].mxu0 %v76
    %v307 = vpop.f32.mrb[0].mxu0
    %v308 = vadd.f32 %v109, %v307
    %v309 = vpop.f32.mrb[0].mxu0
    %310 = vmatprep.mubr.f32.mxu0 0.0
    %311 = vmatmul.mubr.f32.gmra.mrb[0].mxu0 %v77
    %v312 = vpop.f32.mrb[0].mxu0
    %v313 = vadd.f32 %v109, %v312
    %v314 = vpop.f32.mrb[0].mxu0
    %315 = vmatprep.mubr.f32.mxu0 0.0
    %316 = vmatmul.mubr.f32.gmra.mrb[0].mxu0 %v78
    %v317 = vpop.f32.mrb[0].mxu0
    %v318 = vadd.f32 %v109, %v317
    %v319 = vpop.f32.mrb[0].mxu0
    %320 = vmatprep.mubr.f32.mxu0 0.0
    %321 = vmatmul.mubr.f32.gmra.mrb[0].mxu0 %v79
    %v322 = vpop.f32.mrb[0].mxu0
    %v323 = vadd.f32 %v109, %v322
    %v324 = vpop.f32.mrb[0].mxu0
    %325 = vmatprep.mubr.f32.mxu0 0.0
    %326 = vmatmul.mubr.f32.gmra.mrb[0].mxu0 %v80
    %v327 = vpop.f32.mrb[0].mxu0
    %v328 = vadd.f32 %v109, %v327
    %v329 = vpop.f32.mrb[0].mxu0
    %330 = vmatprep.mubr.f32.mxu0 0.0
    %331 = vmatmul.mubr.f32.gmra.mrb[0].mxu0 %v81
    %v332 = vpop.f32.mrb[0].mxu0
    %v333 = vadd.f32 %v109, %v332
    %v334 = vpop.f32.mrb[0].mxu0
    %335 = vmatprep.mubr.f32.mxu0 0.0
    %336 = vmatmul.mubr.f32.gmra.mrb[0].mxu0 %v82
    %v337 = vpop.f32.mrb[0].mxu0
    %v338 = vadd.f32 %v109, %v337
    %v339 = vpop.f32.mrb[0].mxu0
    %340 = vmatprep.mubr.f32.mxu0 0.0
    %341 = vmatmul.mubr.f32.gmra.mrb[0].mxu0 %v83
    %v342 = vpop.f32.mrb[0].mxu0
    %v343 = vadd.f32 %v109, %v342
    %v344 = vpop.f32.mrb[0].mxu0
    %345 = vmatprep.mubr.f32.mxu0 0.0
    %346 = vmatmul.mubr.f32.gmra.mrb[0].mxu0 %v84
    %v347 = vpop.f32.mrb[0].mxu0
    %v348 = vadd.f32 %v109, %v347
    %v349 = vpop.f32.mrb[0].mxu0
    %350 = vmatprep.mubr.f32.mxu0 0.0
    %351 = vmatmul.mubr.f32.gmra.mrb[0].mxu0 %v85
    %v352 = vpop.f32.mrb[0].mxu0
    %v353 = vadd.f32 %v109, %v352
    %v354 = vpop.f32.mrb[0].mxu0
    %355 = vmatprep.mubr.f32.mxu0 0.0
    %356 = vmatmul.mubr.f32.gmra.mrb[0].mxu0 %v86
    %v357 = vpop.f32.mrb[0].mxu0
    %v358 = vadd.f32 %v109, %v357
    %v359 = vpop.f32.mrb[0].mxu0
    %360 = vmatprep.mubr.f32.mxu0 0.0
    %361 = vmatmul.mubr.f32.gmra.mrb[0].mxu0 %v87
    %v362 = vpop.f32.mrb[0].mxu0
    %v363 = vadd.f32 %v109, %v362
    %v364 = vpop.f32.mrb[0].mxu0
    %365 = vdwg.mxu0
    %v366 = vmax.f32 %v178, 0.0
    %v367 = vmax.f32 %v183, 0.0
    %v368 = vmax.f32 %v188, 0.0
    %v369 = vmax.f32 %v193, 0.0
    %v370 = vmax.f32 %v198, 0.0
    %v371 = vmax.f32 %v203, 0.0
    %v372 = vmax.f32 %v208, 0.0
    %v373 = vmax.f32 %v213, 0.0
    %v374 = vmax.f32 %v218, 0.0
    %v375 = vmax.f32 %v223, 0.0
    %v376 = vmax.f32 %v228, 0.0
    %v377 = vmax.f32 %v233, 0.0
    %v378 = vmax.f32 %v238, 0.0
    %v379 = vmax.f32 %v243, 0.0
    %v380 = vmax.f32 %v248, 0.0
    %v381 = vmax.f32 %v253, 0.0
    %v382 = vmax.f32 %v258, 0.0
    %v383 = vmax.f32 %v263, 0.0
    %v384 = vmax.f32 %v268, 0.0
    %v385 = vmax.f32 %v273, 0.0
    %v386 = vmax.f32 %v278, 0.0
    %v387 = vmax.f32 %v283, 0.0
    %v388 = vmax.f32 %v288, 0.0
    %v389 = vmax.f32 %v293, 0.0
    %v390 = vmax.f32 %v298, 0.0
    %v391 = vmax.f32 %v303, 0.0
    %v392 = vmax.f32 %v308, 0.0
    %v393 = vmax.f32 %v313, 0.0
    %v394 = vmax.f32 %v318, 0.0
    %v395 = vmax.f32 %v323, 0.0
    %v396 = vmax.f32 %v328, 0.0
    %v397 = vmax.f32 %v333, 0.0
    %v398 = vmax.f32 %v338, 0.0
    %v399 = vmax.f32 %v343, 0.0
    %v400 = vmax.f32 %v348, 0.0
    %v401 = vmax.f32 %v353, 0.0
    %v402 = vmax.f32 %v358, 0.0
    %v403 = vmax.f32 %v363, 0.0
    %v404 = vld [vmem:[%s3] sm:$0x1]
    %v406 = vlaneseq
    %v407 = vshrl.u32 %v406, 7
    %v408 = vsub.s32 0, %v407
    %v409 = vrot.slane %v404, %v408
    %v411 = vmul.f32 %v366, %v409
    %v412 = vmul.f32 %v367, %v409
    %v413 = vmul.f32 %v368, %v409
    %v414 = vmul.f32 %v369, %v409
    %v415 = vmul.f32 %v370, %v409
    %v416 = vmul.f32 %v371, %v409
    %v417 = vmul.f32 %v372, %v409
    %v418 = vmul.f32 %v373, %v409
    %v419 = vmul.f32 %v374, %v409
    %v420 = vmul.f32 %v375, %v409
    %v421 = vmul.f32 %v376, %v409
    %v422 = vmul.f32 %v377, %v409
    %v423 = vmul.f32 %v378, %v409
    %v424 = vmul.f32 %v379, %v409
    %v425 = vmul.f32 %v380, %v409
    %v426 = vmul.f32 %v381, %v409
    %v427 = vmul.f32 %v382, %v409
    %v428 = vmul.f32 %v383, %v409
    %v429 = vmul.f32 %v384, %v409
    %v430 = vmul.f32 %v385, %v409
    %v431 = vmul.f32 %v386, %v409
    %v432 = vmul.f32 %v387, %v409
    %v433 = vmul.f32 %v388, %v409
    %v434 = vmul.f32 %v389, %v409
    %v435 = vmul.f32 %v390, %v409
    %v436 = vmul.f32 %v391, %v409
    %v437 = vmul.f32 %v392, %v409
    %v438 = vmul.f32 %v393, %v409
    %v439 = vmul.f32 %v394, %v409
    %v440 = vmul.f32 %v395, %v409
    %v441 = vmul.f32 %v396, %v409
    %v442 = vmul.f32 %v397, %v409
    %v443 = vmul.f32 %v398, %v409
    %v444 = vmul.f32 %v399, %v409
    %v445 = vmul.f32 %v400, %v409
    %v446 = vmul.f32 %v401, %v409
    %v447 = vmul.f32 %v402, %v409
    %v448 = vmul.f32 %v403, %v409
    %449 = vadd.xlane.f32.xlu0 %v411
    %v450 = vpop.xlane.xlu0 %449
    %451 = vadd.xlane.f32.xlu0 %v412
    %v452 = vpop.xlane.xlu0 %451
    %453 = vadd.xlane.f32.xlu0 %v413
    %v454 = vpop.xlane.xlu0 %453
    %455 = vadd.xlane.f32.xlu0 %v414
    %v456 = vpop.xlane.xlu0 %455
    %457 = vadd.xlane.f32.xlu0 %v415
    %v458 = vpop.xlane.xlu0 %457
    %459 = vadd.xlane.f32.xlu0 %v416
    %v460 = vpop.xlane.xlu0 %459
    %461 = vadd.xlane.f32.xlu0 %v417
    %v462 = vpop.xlane.xlu0 %461
    %463 = vadd.xlane.f32.xlu0 %v418
    %v464 = vpop.xlane.xlu0 %463
    %465 = vadd.xlane.f32.xlu0 %v419
    %v466 = vpop.xlane.xlu0 %465
    %467 = vadd.xlane.f32.xlu0 %v420
    %v468 = vpop.xlane.xlu0 %467
    %469 = vadd.xlane.f32.xlu0 %v421
    %v470 = vpop.xlane.xlu0 %469
    %471 = vadd.xlane.f32.xlu0 %v422
    %v472 = vpop.xlane.xlu0 %471
    %473 = vadd.xlane.f32.xlu0 %v423
    %v474 = vpop.xlane.xlu0 %473
    %475 = vadd.xlane.f32.xlu0 %v424
    %v476 = vpop.xlane.xlu0 %475
    %477 = vadd.xlane.f32.xlu0 %v425
    %v478 = vpop.xlane.xlu0 %477
    %479 = vadd.xlane.f32.xlu0 %v426
    %v480 = vpop.xlane.xlu0 %479
    %481 = vadd.xlane.f32.xlu0 %v427
    %v482 = vpop.xlane.xlu0 %481
    %483 = vadd.xlane.f32.xlu0 %v428
    %v484 = vpop.xlane.xlu0 %483
    %485 = vadd.xlane.f32.xlu0 %v429
    %v486 = vpop.xlane.xlu0 %485
    %487 = vadd.xlane.f32.xlu0 %v430
    %v488 = vpop.xlane.xlu0 %487
    %489 = vadd.xlane.f32.xlu0 %v431
    %v490 = vpop.xlane.xlu0 %489
    %491 = vadd.xlane.f32.xlu0 %v432
    %v492 = vpop.xlane.xlu0 %491
    %493 = vadd.xlane.f32.xlu0 %v433
    %v494 = vpop.xlane.xlu0 %493
    %495 = vadd.xlane.f32.xlu0 %v434
    %v496 = vpop.xlane.xlu0 %495
    %497 = vadd.xlane.f32.xlu0 %v435
    %v498 = vpop.xlane.xlu0 %497
    %499 = vadd.xlane.f32.xlu0 %v436
    %v500 = vpop.xlane.xlu0 %499
    %501 = vadd.xlane.f32.xlu0 %v437
    %v502 = vpop.xlane.xlu0 %501
    %503 = vadd.xlane.f32.xlu0 %v438
    %v504 = vpop.xlane.xlu0 %503
    %505 = vadd.xlane.f32.xlu0 %v439
    %v506 = vpop.xlane.xlu0 %505
    %507 = vadd.xlane.f32.xlu0 %v440
    %v508 = vpop.xlane.xlu0 %507
    %509 = vadd.xlane.f32.xlu0 %v441
    %v510 = vpop.xlane.xlu0 %509
    %511 = vadd.xlane.f32.xlu0 %v442
    %v512 = vpop.xlane.xlu0 %511
    %513 = vadd.xlane.f32.xlu0 %v443
    %v514 = vpop.xlane.xlu0 %513
    %515 = vadd.xlane.f32.xlu0 %v444
    %v516 = vpop.xlane.xlu0 %515
    %517 = vadd.xlane.f32.xlu0 %v445
    %v518 = vpop.xlane.xlu0 %517
    %519 = vadd.xlane.f32.xlu0 %v446
    %v520 = vpop.xlane.xlu0 %519
    %521 = vadd.xlane.f32.xlu0 %v447
    %v522 = vpop.xlane.xlu0 %521
    %vm523 = vcmask 1043456
    %v524 = vsel %vm523, %v448, 0.0
    %525 = vadd.xlane.f32.xlu0 %v524
    %v526 = vpop.xlane.xlu0 %525
    %v527 = vld [vmem:[#allocation2] sm:$0x1]
    %v529 = vlaneseq
    %v530 = vshrl.u32 %v529, 7
    %v531 = vsub.s32 0, %v530
    %v532 = vrot.slane %v527, %v531
    %v534 = vadd.f32 %v450, %v532
    %v535 = vadd.f32 %v452, %v532
    %v536 = vadd.f32 %v454, %v532
    %v537 = vadd.f32 %v456, %v532
    %v538 = vadd.f32 %v458, %v532
    %v539 = vadd.f32 %v460, %v532
    %v540 = vadd.f32 %v462, %v532
    %v541 = vadd.f32 %v464, %v532
    %v542 = vadd.f32 %v466, %v532
    %v543 = vadd.f32 %v468, %v532
    %v544 = vadd.f32 %v470, %v532
    %v545 = vadd.f32 %v472, %v532
    %v546 = vadd.f32 %v474, %v532
    %v547 = vadd.f32 %v476, %v532
    %v548 = vadd.f32 %v478, %v532
    %v549 = vadd.f32 %v480, %v532
    %v550 = vadd.f32 %v482, %v532
    %v551 = vadd.f32 %v484, %v532
    %v552 = vadd.f32 %v486, %v532
    %v553 = vadd.f32 %v488, %v532
    %v554 = vadd.f32 %v490, %v532
    %v555 = vadd.f32 %v492, %v532
    %v556 = vadd.f32 %v494, %v532
    %v557 = vadd.f32 %v496, %v532
    %v558 = vadd.f32 %v498, %v532
    %v559 = vadd.f32 %v500, %v532
    %v560 = vadd.f32 %v502, %v532
    %v561 = vadd.f32 %v504, %v532
    %v562 = vadd.f32 %v506, %v532
    %v563 = vadd.f32 %v508, %v532
    %v564 = vadd.f32 %v510, %v532
    %v565 = vadd.f32 %v512, %v532
    %v566 = vadd.f32 %v514, %v532
    %v567 = vadd.f32 %v516, %v532
    %v568 = vadd.f32 %v518, %v532
    %v569 = vadd.f32 %v520, %v532
    %v570 = vadd.f32 %v522, %v532
    %v571 = vadd.f32 %v526, %v532
    %vm572 = vcmask 7168
    %573 = vst.msk [vmem:[%s5] sm:$0xff] %vm572, %v534
    %574 = vst.msk [vmem:[%s5 + $0x8] sm:$0xff] %vm572, %v535
    %575 = vst.msk [vmem:[%s5 + $0x10] sm:$0xff] %vm572, %v536
    %576 = vst.msk [vmem:[%s5 + $0x18] sm:$0xff] %vm572, %v537
    %577 = vst.msk [vmem:[%s5 + $0x20] sm:$0xff] %vm572, %v538
    %578 = vst.msk [vmem:[%s5 + $0x28] sm:$0xff] %vm572, %v539
    %579 = vst.msk [vmem:[%s5 + $0x30] sm:$0xff] %vm572, %v540
    %580 = vst.msk [vmem:[%s5 + $0x38] sm:$0xff] %vm572, %v541
    %581 = vst.msk [vmem:[%s5 + $0x40] sm:$0xff] %vm572, %v542
    %582 = vst.msk [vmem:[%s5 + $0x48] sm:$0xff] %vm572, %v543
    %583 = vst.msk [vmem:[%s5 + $0x50] sm:$0xff] %vm572, %v544
    %584 = vst.msk [vmem:[%s5 + $0x58] sm:$0xff] %vm572, %v545
    %585 = vst.msk [vmem:[%s5 + $0x60] sm:$0xff] %vm572, %v546
    %586 = vst.msk [vmem:[%s5 + $0x68] sm:$0xff] %vm572, %v547
    %587 = vst.msk [vmem:[%s5 + $0x70] sm:$0xff] %vm572, %v548
    %588 = vst.msk [vmem:[%s5 + $0x78] sm:$0xff] %vm572, %v549
    %589 = vst.msk [vmem:[%s5 + $0x80] sm:$0xff] %vm572, %v550
    %590 = vst.msk [vmem:[%s5 + $0x88] sm:$0xff] %vm572, %v551
    %591 = vst.msk [vmem:[%s5 + $0x90] sm:$0xff] %vm572, %v552
    %592 = vst.msk [vmem:[%s5 + $0x98] sm:$0xff] %vm572, %v553
    %593 = vst.msk [vmem:[%s5 + $0xa0] sm:$0xff] %vm572, %v554
    %594 = vst.msk [vmem:[%s5 + $0xa8] sm:$0xff] %vm572, %v555
    %595 = vst.msk [vmem:[%s5 + $0xb0] sm:$0xff] %vm572, %v556
    %596 = vst.msk [vmem:[%s5 + $0xb8] sm:$0xff] %vm572, %v557
    %597 = vst.msk [vmem:[%s5 + $0xc0] sm:$0xff] %vm572, %v558
    %598 = vst.msk [vmem:[%s5 + $0xc8] sm:$0xff] %vm572, %v559
    %599 = vst.msk [vmem:[%s5 + $0xd0] sm:$0xff] %vm572, %v560
    %600 = vst.msk [vmem:[%s5 + $0xd8] sm:$0xff] %vm572, %v561
    %601 = vst.msk [vmem:[%s5 + $0xe0] sm:$0xff] %vm572, %v562
    %602 = vst.msk [vmem:[%s5 + $0xe8] sm:$0xff] %vm572, %v563
    %603 = vst.msk [vmem:[%s5 + $0xf0] sm:$0xff] %vm572, %v564
    %604 = vst.msk [vmem:[%s5 + $0xf8] sm:$0xff] %vm572, %v565
    %605 = vst.msk [vmem:[%s5 + $0x100] sm:$0xff] %vm572, %v566
    %606 = vst.msk [vmem:[%s5 + $0x108] sm:$0xff] %vm572, %v567
    %607 = vst.msk [vmem:[%s5 + $0x110] sm:$0xff] %vm572, %v568
    %608 = vst.msk [vmem:[%s5 + $0x118] sm:$0xff] %vm572, %v569
    %609 = vst.msk [vmem:[%s5 + $0x120] sm:$0xff] %vm572, %v570
    %vm610 = vcmask 3072
    %611 = vst.msk [vmem:[%s5 + $0x128] sm:$0xf] %vm610, %v571
    // Predicated region
    $region30: #{tpu_custom_call.1} parent=1 // pred_check
      _
    $region31: #{tpu_custom_call.1} parent=1 // pred_check_branch
      %613 = sbr.rel (0) target = $region33
    $region32: #{tpu_custom_call.1} parent=1 // pred_region
      _
    $region33: #{tpu_custom_call.1} parent=1 // pred_fallthru
      _
    // Predicated region
    $region34: #{tpu_custom_call.1} parent=1 // pred_check
      _
    $region35: #{tpu_custom_call.1} parent=1 // pred_check_branch
      %615 = sbr.rel (0) target = $region37
    $region36: #{tpu_custom_call.1} parent=1 // pred_region
      _
    $region37: #{tpu_custom_call.1} parent=1 // pred_fallthru
      _
    %616 = vsyncpa [#allocation4], 1
    %617 = vsyncpa [#allocation6], 1

</llo_original>
